<compile_context>
chip_gen: v6e
topology: v6e:2x2x1
jax: 0.10.0
libtpu: 0.0.40
codegen_flags: <defaults>
</compile_context>

<pallas_src>
import functools

import jax
import jax.numpy as jnp
from jax.experimental import pallas as pl
from jax.experimental.pallas import tpu as pltpu


def _gru_recurrence_kernel(gi_ref, whh_ref, bhhn_ref, h_out_ref, h_scratch,
                           *, seq_len, unroll):
    # gi_ref    : (T, Bb, 3H) f32  precomputed x@W_ih^T + b_ih (+ b_hh for r,z), time-major chunk
    # whh_ref   : (H, 3H)          transposed hidden-hidden weight (compute dtype)
    # bhhn_ref  : (1, H) f32       hidden bias of the n gate (applied before the r* product)
    # h_out_ref : (Bb, H)          final hidden state output (batch block)
    # h_scratch : (Bb, H) f32      hidden-state carry across time chunks
    c = pl.program_id(1)                       # time-chunk index (axis 0 = batch block)
    T = gi_ref.shape[0]
    H = h_scratch.shape[-1]

    @pl.when(c == 0)
    def _():
        h_scratch[...] = jnp.zeros_like(h_scratch)

    # Hoist constant loads out of the time loop.
    whh = whh_ref[...]
    bhh_n = bhhn_ref[...]

    ragged = (seq_len % T) != 0
    base = c * T

    # TODO(synk): hold W_hh stationary in the MXU across the chunk via
    # pltpu.matmul_push_rhs / matmul_acc_lhs / matmul_pop when the weight tiles
    # fit the staging registers; at tiny B the per-step dot is weight-push bound.
    def step(t, h):
        # Slice gates directly from the ref (gi is already f32) — keeps per-gate
        # live ranges small and avoids a full (B,3H) slab per step.
        i_r = gi_ref[t, :, :H]
        i_z = gi_ref[t, :, H:2 * H]
        i_n = gi_ref[t, :, 2 * H:]
        gh = jnp.dot(h.astype(whh.dtype), whh,
                     preferred_element_type=jnp.float32)       # (Bb, 3H)
        h_r = gh[:, :H]
        h_z = gh[:, H:2 * H]
        h_n = gh[:, 2 * H:] + bhh_n
        # PyTorch gate order: r, z, n
        r = jax.nn.sigmoid(i_r + h_r)
        z = jax.nn.sigmoid(i_z + h_z)
        n = jnp.tanh(i_n + r * h_n)
        h_new = (1.0 - z) * n + z * h
        if ragged:
            # Last chunk may extend past S; masked steps carry h unchanged.
            h_new = jnp.where(base + t < seq_len, h_new, h)
        return h_new

    h = jax.lax.fori_loop(0, T, step, h_scratch[...], unroll=unroll)
    h_scratch[...] = h

    @pl.when(c == pl.num_programs(1) - 1)
    def _():
        h_out_ref[...] = h.astype(h_out_ref.dtype)


def _pick_time_chunk(S, B, H, max_chunk=16, vmem_budget_bytes=8 << 20):
    """Size the time chunk from a VMEM budget for the double-buffered f32 gi slab,
    capped at max_chunk (keeps the unrolled inner loop small) and at S."""
    bytes_per_step = B * 3 * H * 4                       # f32 gi per timestep
    c = max(1, vmem_budget_bytes // (2 * bytes_per_step))
    return int(min(c, max_chunk, S))


def question_embedding_forward(question, w_ih, w_hh, b_ih, b_hh, *, compute_dtype=None):
    """question: (B, S, E) batch-first, like the PyTorch module.
    w_ih: (3H, E), w_hh: (3H, H), b_ih/b_hh: (3H,)  (PyTorch GRU param shapes).
    compute_dtype: dtype of the matmul *weights/operands* streamed into the MXU
       (defaults to bf16 for H>=1024, else the input dtype).  The hoisted input
       projection (gi), gate math and the hidden-state carry always stay f32.
    Returns final hidden state (B, H)."""
    B, S, E = question.shape
    H = w_hh.shape[1]
    if compute_dtype is None:
        # At production H (e.g. 2048) the resident W_hh^T must be bf16 to fit the
        # v7x/v5e VMEM budgets; at small H keep exact dtype.
        compute_dtype = jnp.bfloat16 if H >= 1024 else question.dtype

    # Fold b_ih and the r/z parts of b_hh into the hoisted input projection;
    # only the n-gate hidden bias must stay inside the recurrence (scaled by r).
    bias_comb = (b_ih.astype(jnp.float32)
                 + jnp.concatenate([b_hh[:2 * H],
                                    jnp.zeros((H,), b_hh.dtype)]).astype(jnp.float32))

    # Hoisted input projection: one big (B*S, E) x (E, 3H) matmul done by XLA,
    # emitted directly in time-major (S, B, 3H) layout.  KEPT IN F32 (not on the
    # per-step MXU path; accuracy >> the negligible extra DMA).
    gi_tm = jnp.einsum(
        'bse,ge->sbg',
        question.astype(compute_dtype), w_ih.astype(compute_dtype),
        preferred_element_type=jnp.float32) + bias_comb      # (S, B, 3H) f32

    whh_t = jnp.transpose(w_hh).astype(compute_dtype)         # (H, 3H)
    bhh_n = b_hh[2 * H:].reshape(1, H).astype(jnp.float32)    # (1, H)

    # Batch blocking: at B >= 16 split the batch across a leading "parallel"
    # grid axis so a megacore / two v7x TCs each run half the (serial) recurrence.
    batch_blocks = 2 if (B >= 16 and B % 16 == 0) else 1
    Bb = B // batch_blocks

    t_chunk = _pick_time_chunk(S, Bb, H)
    num_chunks = pl.cdiv(S, t_chunk)

    # Unroll policy: full unroll only at small H; large H steps are big enough to
    # hide loop overhead and fully unrolling them spills vregs.
    if H >= 1024:
        unroll = 2
    elif H >= 512:
        unroll = 4
    else:
        unroll = True

    # VMEM budget: single-buffered weight block + double-buffered gi chunk
    # + output block + carry scratch + slack.
    itemsize = jnp.dtype(compute_dtype).itemsize
    whh_bytes = H * 3 * H * itemsize
    gi_chunk_bytes = t_chunk * Bb * 3 * H * 4
    out_bytes = Bb * H * jnp.dtype(question.dtype).itemsize
    scratch_bytes = Bb * H * 4
    needed = whh_bytes + 2 * gi_chunk_bytes + 2 * out_bytes + scratch_bytes + (4 << 20)
    vmem_limit = int(min(96 << 20, max(32 << 20, needed)))

    kernel = functools.partial(_gru_recurrence_kernel, seq_len=S, unroll=unroll)

    grid_spec = pltpu.PrefetchScalarGridSpec(
        num_scalar_prefetch=0,
        grid=(batch_blocks, num_chunks),
        in_specs=[
            # Streamed f32 gi chunk (double-buffered by default).
            pl.BlockSpec((t_chunk, Bb, 3 * H), lambda b, c: (c, b, 0)),
            # Constant weight / bias blocks: single-buffer (index_map is constant).
            pl.BlockSpec((H, 3 * H), lambda b, c: (0, 0),
                         pipeline_mode=pl.Buffered(1)),
            pl.BlockSpec((1, H), lambda b, c: (0, 0),
                         pipeline_mode=pl.Buffered(1)),
        ],
        out_specs=pl.BlockSpec((Bb, H), lambda b, c: (b, 0)),
        scratch_shapes=[pltpu.VMEM((Bb, H), jnp.float32)],
    )

    return pl.pallas_call(
        kernel,
        out_shape=jax.ShapeDtypeStruct((B, H), question.dtype),
        grid_spec=grid_spec,
        compiler_params=pltpu.CompilerParams(
            # batch blocks are independent; time chunks carry the recurrence.
            dimension_semantics=("parallel", "arbitrary"),
            vmem_limit_bytes=vmem_limit,
        ),
    )(gi_tm, whh_t, bhh_n)


def _gru_reference(question, w_ih, w_hh, b_ih, b_hh):
    """Pure-JAX reference of the PyTorch GRU final hidden state."""
    B, S, E = question.shape
    H = w_hh.shape[1]

    def step(h, x_t):
        gi = x_t @ w_ih.T + b_ih
        gh = h @ w_hh.T + b_hh
        i_r, i_z, i_n = gi[:, :H], gi[:, H:2 * H], gi[:, 2 * H:]
        h_r, h_z, h_n = gh[:, :H], gh[:, H:2 * H], gh[:, 2 * H:]
        r = jax.nn.sigmoid(i_r + h_r)
        z = jax.nn.sigmoid(i_z + h_z)
        n = jnp.tanh(i_n + r * h_n)
        h_new = (1.0 - z) * n + z * h
        return h_new, None

    h0 = jnp.zeros((B, H), question.dtype)
    x_tm = jnp.transpose(question, (1, 0, 2))
    h_final, _ = jax.lax.scan(step, h0, x_tm)
    return h_final


if __name__ == "__main__":
    # Small shapes consistent with the module (word_embedding_size=E, hidden_size=H)
    B, S, E, H = 8, 8, 128, 128

    key = jax.random.PRNGKey(0)
    k1, k2, k3, k4, k5 = jax.random.split(key, 5)
    scale = 1.0 / jnp.sqrt(jnp.float32(H))

    question = jax.random.normal(k1, (B, S, E), dtype=jnp.float32)
    w_ih = jax.random.uniform(k2, (3 * H, E), jnp.float32, -scale, scale)
    w_hh = jax.random.uniform(k3, (3 * H, H), jnp.float32, -scale, scale)
    b_ih = jax.random.uniform(k4, (3 * H,), jnp.float32, -scale, scale)
    b_hh = jax.random.uniform(k5, (3 * H,), jnp.float32, -scale, scale)

    ref = _gru_reference(question, w_ih, w_hh, b_ih, b_hh)

    # f32 path (exact comparison vs reference).
    out = question_embedding_forward(question, w_ih, w_hh, b_ih, b_hh)
    out = jax.block_until_ready(out)
    assert out.shape == (B, H)
    assert jnp.allclose(out, ref, atol=1e-5, rtol=1e-5), "f32 mismatch vs reference"

    # bf16 weight path (production configuration); gi / gate math stay f32,
    # so the tolerance can be much tighter than before.
    out_bf16 = question_embedding_forward(
        question, w_ih, w_hh, b_ih, b_hh, compute_dtype=jnp.bfloat16)
    out_bf16 = jax.block_until_ready(out_bf16)
    assert out_bf16.shape == (B, H)
    assert jnp.allclose(out_bf16, ref, atol=5e-2, rtol=5e-2), "bf16 mismatch vs reference"

    # Ragged-S path (S not divisible by the time chunk) to exercise the mask.
    S2 = 7
    question2 = jax.random.normal(k1, (B, S2, E), dtype=jnp.float32)
    ref2 = _gru_reference(question2, w_ih, w_hh, b_ih, b_hh)
    out2 = question_embedding_forward(question2, w_ih, w_hh, b_ih, b_hh)
    out2 = jax.block_until_ready(out2)
    assert jnp.allclose(out2, ref2, atol=1e-5, rtol=1e-5), "ragged-S mismatch vs reference"

    print("KERNEL_OK")
</pallas_src>

<mosaic_0001>
module attributes {stable_mosaic.version = 11 : i64} {
  func.func @_gru_recurrence_kernel(%arg0: i32, %arg1: i32, %arg2: memref<8x8x384xf32, #tpu.memory_space<vmem>>, %arg3: memref<128x384xf32, #tpu.memory_space<vmem>>, %arg4: memref<1x128xf32, #tpu.memory_space<vmem>>, %arg5: memref<8x128xf32, #tpu.memory_space<vmem>>, %arg6: memref<8x128xf32, #tpu.memory_space<vmem>>) attributes {dimension_semantics = [#tpu.dimension_semantics<parallel>, #tpu.dimension_semantics<arbitrary>], iteration_bounds = array<i64: 1, 1>, scalar_prefetch = 0 : i64, scratch_operands = 1 : i64, tpu.core_type = #tpu.core_type<tc>, window_params = [{transform_indices = @transform_0, window_bounds = array<i64: 8, 8, 384>}, {pipeline_mode = #tpu.pipeline_mode<synchronous>, transform_indices = @transform_1, window_bounds = array<i64: 128, 384>}, {pipeline_mode = #tpu.pipeline_mode<synchronous>, transform_indices = @transform_2, window_bounds = array<i64: 1, 128>}, {transform_indices = @transform_3, window_bounds = array<i64: 8, 128>}]} {
    %c0_i32 = arith.constant 0 : i32
    %0 = arith.cmpi eq, %arg1, %c0_i32 : i32
    %1 = arith.extui %0 : i1 to i32
    %c0_i32_0 = arith.constant 0 : i32
    %2 = arith.cmpi ne, %1, %c0_i32_0 : i32
    scf.if %2 {
      %cst_88 = arith.constant 0.000000e+00 : f32
      %290 = vector.broadcast %cst_88 : f32 to vector<8x128xf32>
      %c0_89 = arith.constant 0 : index
      %c0_90 = arith.constant 0 : index
      %291 = vector.load %arg6[%c0_89, %c0_90] : memref<8x128xf32, #tpu.memory_space<vmem>>, vector<8x128xf32>
      tpu.vector_store %arg6[%c0_89, %c0_90], %290 {strides = array<i32>} : memref<8x128xf32, #tpu.memory_space<vmem>>, vector<8x128xf32>,
    } else {
    }
    %c0 = arith.constant 0 : index
    %c0_1 = arith.constant 0 : index
    %3 = vector.load %arg3[%c0, %c0_1] : memref<128x384xf32, #tpu.memory_space<vmem>>, vector<128x384xf32>
    %c0_2 = arith.constant 0 : index
    %c0_3 = arith.constant 0 : index
    %4 = vector.load %arg4[%c0_2, %c0_3] : memref<1x128xf32, #tpu.memory_space<vmem>>, vector<1x128xf32>
    %c0_4 = arith.constant 0 : index
    %c0_5 = arith.constant 0 : index
    %5 = vector.load %arg6[%c0_4, %c0_5] : memref<8x128xf32, #tpu.memory_space<vmem>>, vector<8x128xf32>
    %c0_i32_6 = arith.constant 0 : i32
    %6 = arith.index_cast %c0_i32_6 : i32 to index
    %c0_7 = arith.constant 0 : index
    %c0_8 = arith.constant 0 : index
    %7 = vector.load %arg2[%6, %c0_7, %c0_8] : memref<8x8x384xf32, #tpu.memory_space<vmem>>, vector<1x8x128xf32>
    %8 = vector.shape_cast %7 : vector<1x8x128xf32> to vector<8x128xf32>
    %9 = arith.index_cast %c0_i32_6 : i32 to index
    %c0_9 = arith.constant 0 : index
    %c128 = arith.constant 128 : index
    %10 = vector.load %arg2[%9, %c0_9, %c128] : memref<8x8x384xf32, #tpu.memory_space<vmem>>, vector<1x8x128xf32>
    %11 = vector.shape_cast %10 : vector<1x8x128xf32> to vector<8x128xf32>
    %12 = arith.index_cast %c0_i32_6 : i32 to index
    %c0_10 = arith.constant 0 : index
    %c256 = arith.constant 256 : index
    %13 = vector.load %arg2[%12, %c0_10, %c256] : memref<8x8x384xf32, #tpu.memory_space<vmem>>, vector<1x8x128xf32>
    %14 = vector.shape_cast %13 : vector<1x8x128xf32> to vector<8x128xf32>
    %cst = arith.constant dense<0.000000e+00> : vector<8x384xf32>
    %15 = tpu.matmul %5, %3, %cst {dimension_numbers = #tpu.dot_dimension_numbers<[1], [0], [0], [1], [0, 0, 1, 1], [], []>} : vector<8x128xf32>, vector<128x384xf32>, vector<8x384xf32> -> vector<8x384xf32>
    %16 = vector.extract_strided_slice %15 {offsets = [0, 0], sizes = [8, 128], strides = [1, 1]} : vector<8x384xf32> to vector<8x128xf32>
    %17 = vector.extract_strided_slice %15 {offsets = [0, 128], sizes = [8, 128], strides = [1, 1]} : vector<8x384xf32> to vector<8x128xf32>
    %18 = vector.extract_strided_slice %15 {offsets = [0, 256], sizes = [8, 128], strides = [1, 1]} : vector<8x384xf32> to vector<8x128xf32>
    %19 = vector.broadcast %4 : vector<1x128xf32> to vector<8x128xf32>
    %20 = arith.addf %18, %19 : vector<8x128xf32>
    %21 = arith.addf %8, %16 : vector<8x128xf32>
    %22 = arith.negf %21 : vector<8x128xf32>
    %23 = math.exp %22 : vector<8x128xf32>
    %cst_11 = arith.constant 1.000000e+00 : f32
    %24 = vector.broadcast %cst_11 : f32 to vector<8x128xf32>
    %25 = arith.addf %24, %23 : vector<8x128xf32>
    %26 = arith.divf %24, %25 : vector<8x128xf32>
    %27 = arith.addf %11, %17 : vector<8x128xf32>
    %28 = arith.negf %27 : vector<8x128xf32>
    %29 = math.exp %28 : vector<8x128xf32>
    %cst_12 = arith.constant 1.000000e+00 : f32
    %30 = vector.broadcast %cst_12 : f32 to vector<8x128xf32>
    %31 = arith.addf %30, %29 : vector<8x128xf32>
    %32 = arith.divf %30, %31 : vector<8x128xf32>
    %33 = arith.mulf %26, %20 : vector<8x128xf32>
    %34 = arith.addf %14, %33 : vector<8x128xf32>
    %35 = math.tanh %34 : vector<8x128xf32>
    %cst_13 = arith.constant 1.000000e+00 : f32
    %36 = vector.broadcast %cst_13 : f32 to vector<8x128xf32>
    %37 = arith.subf %36, %32 : vector<8x128xf32>
    %38 = arith.mulf %37, %35 : vector<8x128xf32>
    %39 = arith.mulf %32, %5 : vector<8x128xf32>
    %40 = arith.addf %38, %39 : vector<8x128xf32>
    %c1_i32 = arith.constant 1 : i32
    %41 = arith.index_cast %c1_i32 : i32 to index
    %c0_14 = arith.constant 0 : index
    %c0_15 = arith.constant 0 : index
    %42 = vector.load %arg2[%41, %c0_14, %c0_15] : memref<8x8x384xf32, #tpu.memory_space<vmem>>, vector<1x8x128xf32>
    %43 = vector.shape_cast %42 : vector<1x8x128xf32> to vector<8x128xf32>
    %44 = arith.index_cast %c1_i32 : i32 to index
    %c0_16 = arith.constant 0 : index
    %c128_17 = arith.constant 128 : index
    %45 = vector.load %arg2[%44, %c0_16, %c128_17] : memref<8x8x384xf32, #tpu.memory_space<vmem>>, vector<1x8x128xf32>
    %46 = vector.shape_cast %45 : vector<1x8x128xf32> to vector<8x128xf32>
    %47 = arith.index_cast %c1_i32 : i32 to index
    %c0_18 = arith.constant 0 : index
    %c256_19 = arith.constant 256 : index
    %48 = vector.load %arg2[%47, %c0_18, %c256_19] : memref<8x8x384xf32, #tpu.memory_space<vmem>>, vector<1x8x128xf32>
    %49 = vector.shape_cast %48 : vector<1x8x128xf32> to vector<8x128xf32>
    %cst_20 = arith.constant dense<0.000000e+00> : vector<8x384xf32>
    %50 = tpu.matmul %40, %3, %cst_20 {dimension_numbers = #tpu.dot_dimension_numbers<[1], [0], [0], [1], [0, 0, 1, 1], [], []>} : vector<8x128xf32>, vector<128x384xf32>, vector<8x384xf32> -> vector<8x384xf32>
    %51 = vector.extract_strided_slice %50 {offsets = [0, 0], sizes = [8, 128], strides = [1, 1]} : vector<8x384xf32> to vector<8x128xf32>
    %52 = vector.extract_strided_slice %50 {offsets = [0, 128], sizes = [8, 128], strides = [1, 1]} : vector<8x384xf32> to vector<8x128xf32>
    %53 = vector.extract_strided_slice %50 {offsets = [0, 256], sizes = [8, 128], strides = [1, 1]} : vector<8x384xf32> to vector<8x128xf32>
    %54 = vector.broadcast %4 : vector<1x128xf32> to vector<8x128xf32>
    %55 = arith.addf %53, %54 : vector<8x128xf32>
    %56 = arith.addf %43, %51 : vector<8x128xf32>
    %57 = arith.negf %56 : vector<8x128xf32>
    %58 = math.exp %57 : vector<8x128xf32>
    %cst_21 = arith.constant 1.000000e+00 : f32
    %59 = vector.broadcast %cst_21 : f32 to vector<8x128xf32>
    %60 = arith.addf %59, %58 : vector<8x128xf32>
    %61 = arith.divf %59, %60 : vector<8x128xf32>
    %62 = arith.addf %46, %52 : vector<8x128xf32>
    %63 = arith.negf %62 : vector<8x128xf32>
    %64 = math.exp %63 : vector<8x128xf32>
    %cst_22 = arith.constant 1.000000e+00 : f32
    %65 = vector.broadcast %cst_22 : f32 to vector<8x128xf32>
    %66 = arith.addf %65, %64 : vector<8x128xf32>
    %67 = arith.divf %65, %66 : vector<8x128xf32>
    %68 = arith.mulf %61, %55 : vector<8x128xf32>
    %69 = arith.addf %49, %68 : vector<8x128xf32>
    %70 = math.tanh %69 : vector<8x128xf32>
    %cst_23 = arith.constant 1.000000e+00 : f32
    %71 = vector.broadcast %cst_23 : f32 to vector<8x128xf32>
    %72 = arith.subf %71, %67 : vector<8x128xf32>
    %73 = arith.mulf %72, %70 : vector<8x128xf32>
    %74 = arith.mulf %67, %40 : vector<8x128xf32>
    %75 = arith.addf %73, %74 : vector<8x128xf32>
    %c2_i32 = arith.constant 2 : i32
    %76 = arith.index_cast %c2_i32 : i32 to index
    %c0_24 = arith.constant 0 : index
    %c0_25 = arith.constant 0 : index
    %77 = vector.load %arg2[%76, %c0_24, %c0_25] : memref<8x8x384xf32, #tpu.memory_space<vmem>>, vector<1x8x128xf32>
    %78 = vector.shape_cast %77 : vector<1x8x128xf32> to vector<8x128xf32>
    %79 = arith.index_cast %c2_i32 : i32 to index
    %c0_26 = arith.constant 0 : index
    %c128_27 = arith.constant 128 : index
    %80 = vector.load %arg2[%79, %c0_26, %c128_27] : memref<8x8x384xf32, #tpu.memory_space<vmem>>, vector<1x8x128xf32>
    %81 = vector.shape_cast %80 : vector<1x8x128xf32> to vector<8x128xf32>
    %82 = arith.index_cast %c2_i32 : i32 to index
    %c0_28 = arith.constant 0 : index
    %c256_29 = arith.constant 256 : index
    %83 = vector.load %arg2[%82, %c0_28, %c256_29] : memref<8x8x384xf32, #tpu.memory_space<vmem>>, vector<1x8x128xf32>
    %84 = vector.shape_cast %83 : vector<1x8x128xf32> to vector<8x128xf32>
    %cst_30 = arith.constant dense<0.000000e+00> : vector<8x384xf32>
    %85 = tpu.matmul %75, %3, %cst_30 {dimension_numbers = #tpu.dot_dimension_numbers<[1], [0], [0], [1], [0, 0, 1, 1], [], []>} : vector<8x128xf32>, vector<128x384xf32>, vector<8x384xf32> -> vector<8x384xf32>
    %86 = vector.extract_strided_slice %85 {offsets = [0, 0], sizes = [8, 128], strides = [1, 1]} : vector<8x384xf32> to vector<8x128xf32>
    %87 = vector.extract_strided_slice %85 {offsets = [0, 128], sizes = [8, 128], strides = [1, 1]} : vector<8x384xf32> to vector<8x128xf32>
    %88 = vector.extract_strided_slice %85 {offsets = [0, 256], sizes = [8, 128], strides = [1, 1]} : vector<8x384xf32> to vector<8x128xf32>
    %89 = vector.broadcast %4 : vector<1x128xf32> to vector<8x128xf32>
    %90 = arith.addf %88, %89 : vector<8x128xf32>
    %91 = arith.addf %78, %86 : vector<8x128xf32>
    %92 = arith.negf %91 : vector<8x128xf32>
    %93 = math.exp %92 : vector<8x128xf32>
    %cst_31 = arith.constant 1.000000e+00 : f32
    %94 = vector.broadcast %cst_31 : f32 to vector<8x128xf32>
    %95 = arith.addf %94, %93 : vector<8x128xf32>
    %96 = arith.divf %94, %95 : vector<8x128xf32>
    %97 = arith.addf %81, %87 : vector<8x128xf32>
    %98 = arith.negf %97 : vector<8x128xf32>
    %99 = math.exp %98 : vector<8x128xf32>
    %cst_32 = arith.constant 1.000000e+00 : f32
    %100 = vector.broadcast %cst_32 : f32 to vector<8x128xf32>
    %101 = arith.addf %100, %99 : vector<8x128xf32>
    %102 = arith.divf %100, %101 : vector<8x128xf32>
    %103 = arith.mulf %96, %90 : vector<8x128xf32>
    %104 = arith.addf %84, %103 : vector<8x128xf32>
    %105 = math.tanh %104 : vector<8x128xf32>
    %cst_33 = arith.constant 1.000000e+00 : f32
    %106 = vector.broadcast %cst_33 : f32 to vector<8x128xf32>
    %107 = arith.subf %106, %102 : vector<8x128xf32>
    %108 = arith.mulf %107, %105 : vector<8x128xf32>
    %109 = arith.mulf %102, %75 : vector<8x128xf32>
    %110 = arith.addf %108, %109 : vector<8x128xf32>
    %c3_i32 = arith.constant 3 : i32
    %111 = arith.index_cast %c3_i32 : i32 to index
    %c0_34 = arith.constant 0 : index
    %c0_35 = arith.constant 0 : index
    %112 = vector.load %arg2[%111, %c0_34, %c0_35] : memref<8x8x384xf32, #tpu.memory_space<vmem>>, vector<1x8x128xf32>
    %113 = vector.shape_cast %112 : vector<1x8x128xf32> to vector<8x128xf32>
    %114 = arith.index_cast %c3_i32 : i32 to index
    %c0_36 = arith.constant 0 : index
    %c128_37 = arith.constant 128 : index
    %115 = vector.load %arg2[%114, %c0_36, %c128_37] : memref<8x8x384xf32, #tpu.memory_space<vmem>>, vector<1x8x128xf32>
    %116 = vector.shape_cast %115 : vector<1x8x128xf32> to vector<8x128xf32>
    %117 = arith.index_cast %c3_i32 : i32 to index
    %c0_38 = arith.constant 0 : index
    %c256_39 = arith.constant 256 : index
    %118 = vector.load %arg2[%117, %c0_38, %c256_39] : memref<8x8x384xf32, #tpu.memory_space<vmem>>, vector<1x8x128xf32>
    %119 = vector.shape_cast %118 : vector<1x8x128xf32> to vector<8x128xf32>
    %cst_40 = arith.constant dense<0.000000e+00> : vector<8x384xf32>
    %120 = tpu.matmul %110, %3, %cst_40 {dimension_numbers = #tpu.dot_dimension_numbers<[1], [0], [0], [1], [0, 0, 1, 1], [], []>} : vector<8x128xf32>, vector<128x384xf32>, vector<8x384xf32> -> vector<8x384xf32>
    %121 = vector.extract_strided_slice %120 {offsets = [0, 0], sizes = [8, 128], strides = [1, 1]} : vector<8x384xf32> to vector<8x128xf32>
    %122 = vector.extract_strided_slice %120 {offsets = [0, 128], sizes = [8, 128], strides = [1, 1]} : vector<8x384xf32> to vector<8x128xf32>
    %123 = vector.extract_strided_slice %120 {offsets = [0, 256], sizes = [8, 128], strides = [1, 1]} : vector<8x384xf32> to vector<8x128xf32>
    %124 = vector.broadcast %4 : vector<1x128xf32> to vector<8x128xf32>
    %125 = arith.addf %123, %124 : vector<8x128xf32>
    %126 = arith.addf %113, %121 : vector<8x128xf32>
    %127 = arith.negf %126 : vector<8x128xf32>
    %128 = math.exp %127 : vector<8x128xf32>
    %cst_41 = arith.constant 1.000000e+00 : f32
    %129 = vector.broadcast %cst_41 : f32 to vector<8x128xf32>
    %130 = arith.addf %129, %128 : vector<8x128xf32>
    %131 = arith.divf %129, %130 : vector<8x128xf32>
    %132 = arith.addf %116, %122 : vector<8x128xf32>
    %133 = arith.negf %132 : vector<8x128xf32>
    %134 = math.exp %133 : vector<8x128xf32>
    %cst_42 = arith.constant 1.000000e+00 : f32
    %135 = vector.broadcast %cst_42 : f32 to vector<8x128xf32>
    %136 = arith.addf %135, %134 : vector<8x128xf32>
    %137 = arith.divf %135, %136 : vector<8x128xf32>
    %138 = arith.mulf %131, %125 : vector<8x128xf32>
    %139 = arith.addf %119, %138 : vector<8x128xf32>
    %140 = math.tanh %139 : vector<8x128xf32>
    %cst_43 = arith.constant 1.000000e+00 : f32
    %141 = vector.broadcast %cst_43 : f32 to vector<8x128xf32>
    %142 = arith.subf %141, %137 : vector<8x128xf32>
    %143 = arith.mulf %142, %140 : vector<8x128xf32>
    %144 = arith.mulf %137, %110 : vector<8x128xf32>
    %145 = arith.addf %143, %144 : vector<8x128xf32>
    %c4_i32 = arith.constant 4 : i32
    %146 = arith.index_cast %c4_i32 : i32 to index
    %c0_44 = arith.constant 0 : index
    %c0_45 = arith.constant 0 : index
    %147 = vector.load %arg2[%146, %c0_44, %c0_45] : memref<8x8x384xf32, #tpu.memory_space<vmem>>, vector<1x8x128xf32>
    %148 = vector.shape_cast %147 : vector<1x8x128xf32> to vector<8x128xf32>
    %149 = arith.index_cast %c4_i32 : i32 to index
    %c0_46 = arith.constant 0 : index
    %c128_47 = arith.constant 128 : index
    %150 = vector.load %arg2[%149, %c0_46, %c128_47] : memref<8x8x384xf32, #tpu.memory_space<vmem>>, vector<1x8x128xf32>
    %151 = vector.shape_cast %150 : vector<1x8x128xf32> to vector<8x128xf32>
    %152 = arith.index_cast %c4_i32 : i32 to index
    %c0_48 = arith.constant 0 : index
    %c256_49 = arith.constant 256 : index
    %153 = vector.load %arg2[%152, %c0_48, %c256_49] : memref<8x8x384xf32, #tpu.memory_space<vmem>>, vector<1x8x128xf32>
    %154 = vector.shape_cast %153 : vector<1x8x128xf32> to vector<8x128xf32>
    %cst_50 = arith.constant dense<0.000000e+00> : vector<8x384xf32>
    %155 = tpu.matmul %145, %3, %cst_50 {dimension_numbers = #tpu.dot_dimension_numbers<[1], [0], [0], [1], [0, 0, 1, 1], [], []>} : vector<8x128xf32>, vector<128x384xf32>, vector<8x384xf32> -> vector<8x384xf32>
    %156 = vector.extract_strided_slice %155 {offsets = [0, 0], sizes = [8, 128], strides = [1, 1]} : vector<8x384xf32> to vector<8x128xf32>
    %157 = vector.extract_strided_slice %155 {offsets = [0, 128], sizes = [8, 128], strides = [1, 1]} : vector<8x384xf32> to vector<8x128xf32>
    %158 = vector.extract_strided_slice %155 {offsets = [0, 256], sizes = [8, 128], strides = [1, 1]} : vector<8x384xf32> to vector<8x128xf32>
    %159 = vector.broadcast %4 : vector<1x128xf32> to vector<8x128xf32>
    %160 = arith.addf %158, %159 : vector<8x128xf32>
    %161 = arith.addf %148, %156 : vector<8x128xf32>
    %162 = arith.negf %161 : vector<8x128xf32>
    %163 = math.exp %162 : vector<8x128xf32>
    %cst_51 = arith.constant 1.000000e+00 : f32
    %164 = vector.broadcast %cst_51 : f32 to vector<8x128xf32>
    %165 = arith.addf %164, %163 : vector<8x128xf32>
    %166 = arith.divf %164, %165 : vector<8x128xf32>
    %167 = arith.addf %151, %157 : vector<8x128xf32>
    %168 = arith.negf %167 : vector<8x128xf32>
    %169 = math.exp %168 : vector<8x128xf32>
    %cst_52 = arith.constant 1.000000e+00 : f32
    %170 = vector.broadcast %cst_52 : f32 to vector<8x128xf32>
    %171 = arith.addf %170, %169 : vector<8x128xf32>
    %172 = arith.divf %170, %171 : vector<8x128xf32>
    %173 = arith.mulf %166, %160 : vector<8x128xf32>
    %174 = arith.addf %154, %173 : vector<8x128xf32>
    %175 = math.tanh %174 : vector<8x128xf32>
    %cst_53 = arith.constant 1.000000e+00 : f32
    %176 = vector.broadcast %cst_53 : f32 to vector<8x128xf32>
    %177 = arith.subf %176, %172 : vector<8x128xf32>
    %178 = arith.mulf %177, %175 : vector<8x128xf32>
    %179 = arith.mulf %172, %145 : vector<8x128xf32>
    %180 = arith.addf %178, %179 : vector<8x128xf32>
    %c5_i32 = arith.constant 5 : i32
    %181 = arith.index_cast %c5_i32 : i32 to index
    %c0_54 = arith.constant 0 : index
    %c0_55 = arith.constant 0 : index
    %182 = vector.load %arg2[%181, %c0_54, %c0_55] : memref<8x8x384xf32, #tpu.memory_space<vmem>>, vector<1x8x128xf32>
    %183 = vector.shape_cast %182 : vector<1x8x128xf32> to vector<8x128xf32>
    %184 = arith.index_cast %c5_i32 : i32 to index
    %c0_56 = arith.constant 0 : index
    %c128_57 = arith.constant 128 : index
    %185 = vector.load %arg2[%184, %c0_56, %c128_57] : memref<8x8x384xf32, #tpu.memory_space<vmem>>, vector<1x8x128xf32>
    %186 = vector.shape_cast %185 : vector<1x8x128xf32> to vector<8x128xf32>
    %187 = arith.index_cast %c5_i32 : i32 to index
    %c0_58 = arith.constant 0 : index
    %c256_59 = arith.constant 256 : index
    %188 = vector.load %arg2[%187, %c0_58, %c256_59] : memref<8x8x384xf32, #tpu.memory_space<vmem>>, vector<1x8x128xf32>
    %189 = vector.shape_cast %188 : vector<1x8x128xf32> to vector<8x128xf32>
    %cst_60 = arith.constant dense<0.000000e+00> : vector<8x384xf32>
    %190 = tpu.matmul %180, %3, %cst_60 {dimension_numbers = #tpu.dot_dimension_numbers<[1], [0], [0], [1], [0, 0, 1, 1], [], []>} : vector<8x128xf32>, vector<128x384xf32>, vector<8x384xf32> -> vector<8x384xf32>
    %191 = vector.extract_strided_slice %190 {offsets = [0, 0], sizes = [8, 128], strides = [1, 1]} : vector<8x384xf32> to vector<8x128xf32>
    %192 = vector.extract_strided_slice %190 {offsets = [0, 128], sizes = [8, 128], strides = [1, 1]} : vector<8x384xf32> to vector<8x128xf32>
    %193 = vector.extract_strided_slice %190 {offsets = [0, 256], sizes = [8, 128], strides = [1, 1]} : vector<8x384xf32> to vector<8x128xf32>
    %194 = vector.broadcast %4 : vector<1x128xf32> to vector<8x128xf32>
    %195 = arith.addf %193, %194 : vector<8x128xf32>
    %196 = arith.addf %183, %191 : vector<8x128xf32>
    %197 = arith.negf %196 : vector<8x128xf32>
    %198 = math.exp %197 : vector<8x128xf32>
    %cst_61 = arith.constant 1.000000e+00 : f32
    %199 = vector.broadcast %cst_61 : f32 to vector<8x128xf32>
    %200 = arith.addf %199, %198 : vector<8x128xf32>
    %201 = arith.divf %199, %200 : vector<8x128xf32>
    %202 = arith.addf %186, %192 : vector<8x128xf32>
    %203 = arith.negf %202 : vector<8x128xf32>
    %204 = math.exp %203 : vector<8x128xf32>
    %cst_62 = arith.constant 1.000000e+00 : f32
    %205 = vector.broadcast %cst_62 : f32 to vector<8x128xf32>
    %206 = arith.addf %205, %204 : vector<8x128xf32>
    %207 = arith.divf %205, %206 : vector<8x128xf32>
    %208 = arith.mulf %201, %195 : vector<8x128xf32>
    %209 = arith.addf %189, %208 : vector<8x128xf32>
    %210 = math.tanh %209 : vector<8x128xf32>
    %cst_63 = arith.constant 1.000000e+00 : f32
    %211 = vector.broadcast %cst_63 : f32 to vector<8x128xf32>
    %212 = arith.subf %211, %207 : vector<8x128xf32>
    %213 = arith.mulf %212, %210 : vector<8x128xf32>
    %214 = arith.mulf %207, %180 : vector<8x128xf32>
    %215 = arith.addf %213, %214 : vector<8x128xf32>
    %c6_i32 = arith.constant 6 : i32
    %216 = arith.index_cast %c6_i32 : i32 to index
    %c0_64 = arith.constant 0 : index
    %c0_65 = arith.constant 0 : index
    %217 = vector.load %arg2[%216, %c0_64, %c0_65] : memref<8x8x384xf32, #tpu.memory_space<vmem>>, vector<1x8x128xf32>
    %218 = vector.shape_cast %217 : vector<1x8x128xf32> to vector<8x128xf32>
    %219 = arith.index_cast %c6_i32 : i32 to index
    %c0_66 = arith.constant 0 : index
    %c128_67 = arith.constant 128 : index
    %220 = vector.load %arg2[%219, %c0_66, %c128_67] : memref<8x8x384xf32, #tpu.memory_space<vmem>>, vector<1x8x128xf32>
    %221 = vector.shape_cast %220 : vector<1x8x128xf32> to vector<8x128xf32>
    %222 = arith.index_cast %c6_i32 : i32 to index
    %c0_68 = arith.constant 0 : index
    %c256_69 = arith.constant 256 : index
    %223 = vector.load %arg2[%222, %c0_68, %c256_69] : memref<8x8x384xf32, #tpu.memory_space<vmem>>, vector<1x8x128xf32>
    %224 = vector.shape_cast %223 : vector<1x8x128xf32> to vector<8x128xf32>
    %cst_70 = arith.constant dense<0.000000e+00> : vector<8x384xf32>
    %225 = tpu.matmul %215, %3, %cst_70 {dimension_numbers = #tpu.dot_dimension_numbers<[1], [0], [0], [1], [0, 0, 1, 1], [], []>} : vector<8x128xf32>, vector<128x384xf32>, vector<8x384xf32> -> vector<8x384xf32>
    %226 = vector.extract_strided_slice %225 {offsets = [0, 0], sizes = [8, 128], strides = [1, 1]} : vector<8x384xf32> to vector<8x128xf32>
    %227 = vector.extract_strided_slice %225 {offsets = [0, 128], sizes = [8, 128], strides = [1, 1]} : vector<8x384xf32> to vector<8x128xf32>
    %228 = vector.extract_strided_slice %225 {offsets = [0, 256], sizes = [8, 128], strides = [1, 1]} : vector<8x384xf32> to vector<8x128xf32>
    %229 = vector.broadcast %4 : vector<1x128xf32> to vector<8x128xf32>
    %230 = arith.addf %228, %229 : vector<8x128xf32>
    %231 = arith.addf %218, %226 : vector<8x128xf32>
    %232 = arith.negf %231 : vector<8x128xf32>
    %233 = math.exp %232 : vector<8x128xf32>
    %cst_71 = arith.constant 1.000000e+00 : f32
    %234 = vector.broadcast %cst_71 : f32 to vector<8x128xf32>
    %235 = arith.addf %234, %233 : vector<8x128xf32>
    %236 = arith.divf %234, %235 : vector<8x128xf32>
    %237 = arith.addf %221, %227 : vector<8x128xf32>
    %238 = arith.negf %237 : vector<8x128xf32>
    %239 = math.exp %238 : vector<8x128xf32>
    %cst_72 = arith.constant 1.000000e+00 : f32
    %240 = vector.broadcast %cst_72 : f32 to vector<8x128xf32>
    %241 = arith.addf %240, %239 : vector<8x128xf32>
    %242 = arith.divf %240, %241 : vector<8x128xf32>
    %243 = arith.mulf %236, %230 : vector<8x128xf32>
    %244 = arith.addf %224, %243 : vector<8x128xf32>
    %245 = math.tanh %244 : vector<8x128xf32>
    %cst_73 = arith.constant 1.000000e+00 : f32
    %246 = vector.broadcast %cst_73 : f32 to vector<8x128xf32>
    %247 = arith.subf %246, %242 : vector<8x128xf32>
    %248 = arith.mulf %247, %245 : vector<8x128xf32>
    %249 = arith.mulf %242, %215 : vector<8x128xf32>
    %250 = arith.addf %248, %249 : vector<8x128xf32>
    %c7_i32 = arith.constant 7 : i32
    %251 = arith.index_cast %c7_i32 : i32 to index
    %c0_74 = arith.constant 0 : index
    %c0_75 = arith.constant 0 : index
    %252 = vector.load %arg2[%251, %c0_74, %c0_75] : memref<8x8x384xf32, #tpu.memory_space<vmem>>, vector<1x8x128xf32>
    %253 = vector.shape_cast %252 : vector<1x8x128xf32> to vector<8x128xf32>
    %254 = arith.index_cast %c7_i32 : i32 to index
    %c0_76 = arith.constant 0 : index
    %c128_77 = arith.constant 128 : index
    %255 = vector.load %arg2[%254, %c0_76, %c128_77] : memref<8x8x384xf32, #tpu.memory_space<vmem>>, vector<1x8x128xf32>
    %256 = vector.shape_cast %255 : vector<1x8x128xf32> to vector<8x128xf32>
    %257 = arith.index_cast %c7_i32 : i32 to index
    %c0_78 = arith.constant 0 : index
    %c256_79 = arith.constant 256 : index
    %258 = vector.load %arg2[%257, %c0_78, %c256_79] : memref<8x8x384xf32, #tpu.memory_space<vmem>>, vector<1x8x128xf32>
    %259 = vector.shape_cast %258 : vector<1x8x128xf32> to vector<8x128xf32>
    %cst_80 = arith.constant dense<0.000000e+00> : vector<8x384xf32>
    %260 = tpu.matmul %250, %3, %cst_80 {dimension_numbers = #tpu.dot_dimension_numbers<[1], [0], [0], [1], [0, 0, 1, 1], [], []>} : vector<8x128xf32>, vector<128x384xf32>, vector<8x384xf32> -> vector<8x384xf32>
    %261 = vector.extract_strided_slice %260 {offsets = [0, 0], sizes = [8, 128], strides = [1, 1]} : vector<8x384xf32> to vector<8x128xf32>
    %262 = vector.extract_strided_slice %260 {offsets = [0, 128], sizes = [8, 128], strides = [1, 1]} : vector<8x384xf32> to vector<8x128xf32>
    %263 = vector.extract_strided_slice %260 {offsets = [0, 256], sizes = [8, 128], strides = [1, 1]} : vector<8x384xf32> to vector<8x128xf32>
    %264 = vector.broadcast %4 : vector<1x128xf32> to vector<8x128xf32>
    %265 = arith.addf %263, %264 : vector<8x128xf32>
    %266 = arith.addf %253, %261 : vector<8x128xf32>
    %267 = arith.negf %266 : vector<8x128xf32>
    %268 = math.exp %267 : vector<8x128xf32>
    %cst_81 = arith.constant 1.000000e+00 : f32
    %269 = vector.broadcast %cst_81 : f32 to vector<8x128xf32>
    %270 = arith.addf %269, %268 : vector<8x128xf32>
    %271 = arith.divf %269, %270 : vector<8x128xf32>
    %272 = arith.addf %256, %262 : vector<8x128xf32>
    %273 = arith.negf %272 : vector<8x128xf32>
    %274 = math.exp %273 : vector<8x128xf32>
    %cst_82 = arith.constant 1.000000e+00 : f32
    %275 = vector.broadcast %cst_82 : f32 to vector<8x128xf32>
    %276 = arith.addf %275, %274 : vector<8x128xf32>
    %277 = arith.divf %275, %276 : vector<8x128xf32>
    %278 = arith.mulf %271, %265 : vector<8x128xf32>
    %279 = arith.addf %259, %278 : vector<8x128xf32>
    %280 = math.tanh %279 : vector<8x128xf32>
    %cst_83 = arith.constant 1.000000e+00 : f32
    %281 = vector.broadcast %cst_83 : f32 to vector<8x128xf32>
    %282 = arith.subf %281, %277 : vector<8x128xf32>
    %283 = arith.mulf %282, %280 : vector<8x128xf32>
    %284 = arith.mulf %277, %250 : vector<8x128xf32>
    %285 = arith.addf %283, %284 : vector<8x128xf32>
    %c8_i32 = arith.constant 8 : i32
    %c0_84 = arith.constant 0 : index
    %c0_85 = arith.constant 0 : index
    %286 = vector.load %arg6[%c0_84, %c0_85] : memref<8x128xf32, #tpu.memory_space<vmem>>, vector<8x128xf32>
    tpu.vector_store %arg6[%c0_84, %c0_85], %285 {strides = array<i32>} : memref<8x128xf32, #tpu.memory_space<vmem>>, vector<8x128xf32>,
    %c0_i32_86 = arith.constant 0 : i32
    %287 = arith.cmpi eq, %arg1, %c0_i32_86 : i32
    %288 = arith.extui %287 : i1 to i32
    %c0_i32_87 = arith.constant 0 : i32
    %289 = arith.cmpi ne, %288, %c0_i32_87 : i32
    scf.if %289 {
      %c0_88 = arith.constant 0 : index
      %c0_89 = arith.constant 0 : index
      %290 = vector.load %arg5[%c0_88, %c0_89] : memref<8x128xf32, #tpu.memory_space<vmem>>, vector<8x128xf32>
      tpu.vector_store %arg5[%c0_88, %c0_89], %285 {strides = array<i32>} : memref<8x128xf32, #tpu.memory_space<vmem>>, vector<8x128xf32>,
    } else {
    }
    return
  }
  func.func @transform_0(%arg0: i32, %arg1: i32) -> (i32, i32, i32) {
    %c0_i32 = arith.constant 0 : i32
    %c0_i32_0 = arith.constant 0 : i32
    return %arg1, %arg0, %c0_i32 : i32, i32, i32
  }
  func.func @transform_1(%arg0: i32, %arg1: i32) -> (i32, i32) {
    %c0_i32 = arith.constant 0 : i32
    %c0_i32_0 = arith.constant 0 : i32
    %c0_i32_1 = arith.constant 0 : i32
    return %c0_i32, %c0_i32_0 : i32, i32
  }
  func.func @transform_2(%arg0: i32, %arg1: i32) -> (i32, i32) {
    %c0_i32 = arith.constant 0 : i32
    %c0_i32_0 = arith.constant 0 : i32
    %c0_i32_1 = arith.constant 0 : i32
    return %c0_i32, %c0_i32_0 : i32, i32
  }
  func.func @transform_3(%arg0: i32, %arg1: i32) -> (i32, i32) {
    %c0_i32 = arith.constant 0 : i32
    %c0_i32_0 = arith.constant 0 : i32
    return %arg0, %c0_i32 : i32, i32
  }
}

</mosaic_0001>

<llo_original>
// kernel: tpu_custom_call.1
$region0: #{tpu_custom_call.1}
  #allocation0 [shape = 'u32[]', space=smem, size = 0x4, offset = 0x4, fixed_abs, tag = 'smem constant byte address 0x4 - core index']
  #allocation1 [shape = 'u32[144,128]{1,0:T(1,128)}', space=vmem, size = 0x12000, scoped, tag = 'internal scratch']
  #allocation2 [shape = 'f32[8,128]{1,0:T(8,128)}', space=vmem, size = 0x1000, scoped, tag = 'scratch operand']
  %s0 = inlined_call_operand.hbm [shape: f32[8,8,384], index: 0, kind: input, shape index: {}]
  %s1 = inlined_call_operand.hbm [shape: f32[128,384], index: 1, kind: input, shape index: {}]
  %s2 = inlined_call_operand.vmem [shape: f32[1,128], index: 2, kind: input, shape index: {}]
  %s3 = inlined_call_operand.hbm [shape: f32[8,128], index: 3, kind: output, shape index: {}]
  %s4 = sld [smem:[#allocation0]]
  $region38: #{tpu_custom_call.1} parent=0
    _
  %s6 = ssub.s32 1, %s4
  %s7 = scalar_select 0, %s6, %s4
  $region1: #{tpu_custom_call.1} parent=0
    #allocation3 [shape = 'u8[98304]{0}', space=vmem, size = 0x18000, scoped, tag = 'input window, operand 0, single buffered']
    #allocation4 [shape = 's32[1]{0}', space=sflag, size = 0x4, scoped, tag = 'scoped memory for tpu_custom_call.1']
    #allocation5 [shape = 's32[1]{0}', space=sflag, size = 0x4, scoped, tag = 'scoped memory for tpu_custom_call.1']
    #allocation6 [shape = 'u8[196608]{0}', space=vmem, size = 0x30000, scoped, tag = 'input window, operand 1, single buffered']
    #allocation7 [shape = 's32[1]{0}', space=sflag, size = 0x4, scoped, tag = 'scoped memory for tpu_custom_call.1']
    #allocation8 [shape = 'u8[4096]{0}', space=vmem, size = 0x1000, scoped, tag = 'output window, operand 0, single buffered']
    %8 = vsyncpa [#allocation4], 0
    %9 = vsyncpa [#allocation7], 0
    %10 = vsyncpa [#allocation5], 0
    // Predicated region
    $region2: #{tpu_custom_call.1} parent=1 // pred_check
      _
    $region3: #{tpu_custom_call.1} parent=1 // pred_check_branch
      %12 = sbr.rel (0) target = $region5
    $region4: #{tpu_custom_call.1} parent=1 // pred_region
      %s14 = ssub.s32 3072, 3072
      %15 = vsyncadd [#allocation4], %s14
      %s16 = sshll.u32 [#allocation3], 4
      %s17 = int_to_ptr.vmem [resolvable:$true] %s16
      %22 = dma.hbm_to_vmem [thread:$0]  %s0, 3072, %s17, [#allocation4], 384, 384, 24
    $region5: #{tpu_custom_call.1} parent=1 // pred_fallthru
      _
    // Predicated region
    $region6: #{tpu_custom_call.1} parent=1 // pred_check
      _
    $region7: #{tpu_custom_call.1} parent=1 // pred_check_branch
      %24 = sbr.rel (0) target = $region9
    $region8: #{tpu_custom_call.1} parent=1 // pred_region
      %s26 = ssub.s32 6144, 6144
      %27 = vsyncadd [#allocation7], %s26
      %s28 = sshll.u32 [#allocation6], 4
      %s29 = int_to_ptr.vmem [resolvable:$true] %s28
      %34 = dma.hbm_to_vmem [thread:$0]  %s1, 6144, %s29, [#allocation7], 384, 384, 24
    $region9: #{tpu_custom_call.1} parent=1 // pred_fallthru
      _
    // Predicated region
    $region10: #{tpu_custom_call.1} parent=1 // pred_check
      _
    $region11: #{tpu_custom_call.1} parent=1 // pred_check_branch
      %36 = sbr.rel (0) target = $region13
    $region12: #{tpu_custom_call.1} parent=1 // pred_region
      _
    $region13: #{tpu_custom_call.1} parent=1 // pred_fallthru
      _
    // Predicated region
    $region14: #{tpu_custom_call.1} parent=1 // pred_check
      _
    $region15: #{tpu_custom_call.1} parent=1 // pred_check_branch
      %38 = sbr.rel (0) target = $region17
    $region16: #{tpu_custom_call.1} parent=1 // pred_region
      %39 = dma.done [#allocation4], 3072
    $region17: #{tpu_custom_call.1} parent=1 // pred_fallthru
      _
    // Predicated region
    $region18: #{tpu_custom_call.1} parent=1 // pred_check
      _
    $region19: #{tpu_custom_call.1} parent=1 // pred_check_branch
      %41 = sbr.rel (0) target = $region21
    $region20: #{tpu_custom_call.1} parent=1 // pred_region
      %42 = dma.done [#allocation7], 6144
    $region21: #{tpu_custom_call.1} parent=1 // pred_fallthru
      _
    %p43 = scmp.eq.s32.totalorder 0, 0
    // Predicated region
    $region22: #{tpu_custom_call.1} parent=1 // pred_check
      %p44 = pneg %p43
    $region23: #{tpu_custom_call.1} parent=1 // pred_check_branch
      %46 = sbr.rel (%p44) target = $region25
    $region24: #{tpu_custom_call.1} parent=1 // pred_region
      %47 = vst [vmem:[#allocation2] sm:$0xff] 0.0
    $region25: #{tpu_custom_call.1} parent=1 // pred_fallthru
      _
    %v48 = vld [vmem:[#allocation6] sm:$0xff]
    %v49 = vld [vmem:[#allocation6 + $0x8] sm:$0xff]
    %v50 = vld [vmem:[#allocation6 + $0x10] sm:$0xff]
    %v51 = vld [vmem:[#allocation6 + $0x18] sm:$0xff]
    %v52 = vld [vmem:[#allocation6 + $0x20] sm:$0xff]
    %v53 = vld [vmem:[#allocation6 + $0x28] sm:$0xff]
    %v54 = vld [vmem:[#allocation6 + $0x30] sm:$0xff]
    %v55 = vld [vmem:[#allocation6 + $0x38] sm:$0xff]
    %v56 = vld [vmem:[#allocation6 + $0x40] sm:$0xff]
    %v57 = vld [vmem:[#allocation6 + $0x48] sm:$0xff]
    %v58 = vld [vmem:[#allocation6 + $0x50] sm:$0xff]
    %v59 = vld [vmem:[#allocation6 + $0x58] sm:$0xff]
    %v60 = vld [vmem:[#allocation6 + $0x60] sm:$0xff]
    %v61 = vld [vmem:[#allocation6 + $0x68] sm:$0xff]
    %v62 = vld [vmem:[#allocation6 + $0x70] sm:$0xff]
    %v63 = vld [vmem:[#allocation6 + $0x78] sm:$0xff]
    %v64 = vld [vmem:[#allocation6 + $0x80] sm:$0xff]
    %v65 = vld [vmem:[#allocation6 + $0x88] sm:$0xff]
    %v66 = vld [vmem:[#allocation6 + $0x90] sm:$0xff]
    %v67 = vld [vmem:[#allocation6 + $0x98] sm:$0xff]
    %v68 = vld [vmem:[#allocation6 + $0xa0] sm:$0xff]
    %v69 = vld [vmem:[#allocation6 + $0xa8] sm:$0xff]
    %v70 = vld [vmem:[#allocation6 + $0xb0] sm:$0xff]
    %v71 = vld [vmem:[#allocation6 + $0xb8] sm:$0xff]
    %v72 = vld [vmem:[#allocation6 + $0xc0] sm:$0xff]
    %v73 = vld [vmem:[#allocation6 + $0xc8] sm:$0xff]
    %v74 = vld [vmem:[#allocation6 + $0xd0] sm:$0xff]
    %v75 = vld [vmem:[#allocation6 + $0xd8] sm:$0xff]
    %v76 = vld [vmem:[#allocation6 + $0xe0] sm:$0xff]
    %v77 = vld [vmem:[#allocation6 + $0xe8] sm:$0xff]
    %v78 = vld [vmem:[#allocation6 + $0xf0] sm:$0xff]
    %v79 = vld [vmem:[#allocation6 + $0xf8] sm:$0xff]
    %v80 = vld [vmem:[#allocation6 + $0x100] sm:$0xff]
    %v81 = vld [vmem:[#allocation6 + $0x108] sm:$0xff]
    %v82 = vld [vmem:[#allocation6 + $0x110] sm:$0xff]
    %v83 = vld [vmem:[#allocation6 + $0x118] sm:$0xff]
    %v84 = vld [vmem:[#allocation6 + $0x120] sm:$0xff]
    %v85 = vld [vmem:[#allocation6 + $0x128] sm:$0xff]
    %v86 = vld [vmem:[#allocation6 + $0x130] sm:$0xff]
    %v87 = vld [vmem:[#allocation6 + $0x138] sm:$0xff]
    %v88 = vld [vmem:[#allocation6 + $0x140] sm:$0xff]
    %v89 = vld [vmem:[#allocation6 + $0x148] sm:$0xff]
    %v90 = vld [vmem:[#allocation6 + $0x150] sm:$0xff]
    %v91 = vld [vmem:[#allocation6 + $0x158] sm:$0xff]
    %v92 = vld [vmem:[#allocation6 + $0x160] sm:$0xff]
    %v93 = vld [vmem:[#allocation6 + $0x168] sm:$0xff]
    %v94 = vld [vmem:[#allocation6 + $0x170] sm:$0xff]
    %v95 = vld [vmem:[#allocation6 + $0x178] sm:$0xff]
    %v96 = vld [vmem:[%s2] sm:$0x1]
    %v97 = vld [vmem:[#allocation2] sm:$0xff]
    %v98 = vld [vmem:[#allocation3] sm:$0xff]
    %v99 = vld [vmem:[#allocation3 + $0x8] sm:$0xff]
    %v100 = vld [vmem:[#allocation3 + $0x10] sm:$0xff]
    %101 = vmatprep.subr.mxu0 %v94
    %102 = vmatpush1.msra.mxu0 %v93
    %103 = vmatprep.subr.mxu0 %v91
    %104 = vmatpush1.msra.mxu0 %v90
    %105 = vmatprep.subr.mxu0 %v88
    %106 = vmatpush1.msra.mxu0 %v87
    %107 = vmatprep.subr.mxu0 %v85
    %108 = vmatpush1.msra.mxu0 %v84
    %109 = vmatprep.subr.mxu0 %v82
    %110 = vmatpush1.msra.mxu0 %v81
    %111 = vmatprep.subr.mxu0 %v79
    %112 = vmatpush1.msra.mxu0 %v78
    %113 = vmatprep.subr.mxu0 %v76
    %114 = vmatpush1.msra.mxu0 %v75
    %115 = vmatprep.subr.mxu0 %v73
    %116 = vmatpush1.msra.mxu0 %v72
    %117 = vmatprep.subr.mxu0 %v70
    %118 = vmatpush1.msra.mxu0 %v69
    %119 = vmatprep.subr.mxu0 %v67
    %120 = vmatpush1.msra.mxu0 %v66
    %121 = vmatprep.subr.mxu0 %v64
    %122 = vmatpush1.msra.mxu0 %v63
    %123 = vmatprep.subr.mxu0 %v61
    %124 = vmatpush1.msra.mxu0 %v60
    %125 = vmatprep.subr.mxu0 %v58
    %126 = vmatpush1.msra.mxu0 %v57
    %127 = vmatprep.subr.mxu0 %v55
    %128 = vmatpush1.msra.mxu0 %v54
    %129 = vmatprep.subr.mxu0 %v52
    %130 = vmatpush1.msra.mxu0 %v51
    %131 = vmatprep.subr.mxu0 %v49
    %132 = vmatpush1.msra.mxu0 %v48
    %133 = vmatprep.subr.mxu0 0.0
    %134 = vmatpush2.msra.mxu0 0.0
    %135 = vmatprep.subr.mxu0 0.0
    %136 = vmatpush2.msra.mxu0 0.0
    %137 = vmatprep.subr.mxu0 0.0
    %138 = vmatpush2.msra.mxu0 0.0
    %139 = vmatprep.subr.mxu0 0.0
    %140 = vmatpush2.msra.mxu0 0.0
    %141 = vmatprep.subr.mxu0 0.0
    %142 = vmatpush2.msra.mxu0 0.0
    %143 = vmatprep.subr.mxu0 0.0
    %144 = vmatpush2.msra.mxu0 0.0
    %145 = vmatprep.subr.mxu0 0.0
    %146 = vmatpush2.msra.mxu0 0.0
    %147 = vmatprep.subr.mxu0 0.0
    %148 = vmatpush2.msra.mxu0 0.0
    %149 = vmatprep.subr.mxu0 0.0
    %150 = vmatpush2.msra.mxu0 0.0
    %151 = vmatprep.subr.mxu0 0.0
    %152 = vmatpush2.msra.mxu0 0.0
    %153 = vmatprep.subr.mxu0 0.0
    %154 = vmatpush2.msra.mxu0 0.0
    %155 = vmatprep.subr.mxu0 0.0
    %156 = vmatpush2.msra.mxu0 0.0
    %157 = vmatprep.subr.mxu0 0.0
    %158 = vmatpush2.msra.mxu0 0.0
    %159 = vmatprep.subr.mxu0 0.0
    %160 = vmatpush2.msra.mxu0 0.0
    %161 = vmatprep.subr.mxu0 0.0
    %162 = vmatpush2.msra.mxu0 0.0
    %163 = vmatprep.subr.mxu0 0.0
    %164 = vmatpush2.msra.mxu0 0.0
    %165 = vmatprep.mubr.f32.mxu0 0.0
    %166 = vmatmul.mubr.f32.gmra.mxu0 %v97
    %v167 = vpop.f32.mrf.mxu0
    %v168 = vadd.f32 0.0, %v167
    %v169 = vpop.f32.mrf.mxu0
    %v170 = vadd.f32 0.0, %v169
    %171 = vdwg.mxu0
    %172 = vmatprep.subr.mxu0 0.0
    %173 = vmatpush1.msra.mxu0 %v95
    %174 = vmatprep.subr.mxu0 0.0
    %175 = vmatpush1.msra.mxu0 %v92
    %176 = vmatprep.subr.mxu0 0.0
    %177 = vmatpush1.msra.mxu0 %v89
    %178 = vmatprep.subr.mxu0 0.0
    %179 = vmatpush1.msra.mxu0 %v86
    %180 = vmatprep.subr.mxu0 0.0
    %181 = vmatpush1.msra.mxu0 %v83
    %182 = vmatprep.subr.mxu0 0.0
    %183 = vmatpush1.msra.mxu0 %v80
    %184 = vmatprep.subr.mxu0 0.0
    %185 = vmatpush1.msra.mxu0 %v77
    %186 = vmatprep.subr.mxu0 0.0
    %187 = vmatpush1.msra.mxu0 %v74
    %188 = vmatprep.subr.mxu0 0.0
    %189 = vmatpush1.msra.mxu0 %v71
    %190 = vmatprep.subr.mxu0 0.0
    %191 = vmatpush1.msra.mxu0 %v68
    %192 = vmatprep.subr.mxu0 0.0
    %193 = vmatpush1.msra.mxu0 %v65
    %194 = vmatprep.subr.mxu0 0.0
    %195 = vmatpush1.msra.mxu0 %v62
    %196 = vmatprep.subr.mxu0 0.0
    %197 = vmatpush1.msra.mxu0 %v59
    %198 = vmatprep.subr.mxu0 0.0
    %199 = vmatpush1.msra.mxu0 %v56
    %200 = vmatprep.subr.mxu0 0.0
    %201 = vmatpush1.msra.mxu0 %v53
    %202 = vmatprep.subr.mxu0 0.0
    %203 = vmatpush1.msra.mxu0 %v50
    %204 = vmatprep.subr.mxu0 0.0
    %205 = vmatpush2.msra.mxu0 0.0
    %206 = vmatprep.subr.mxu0 0.0
    %207 = vmatpush2.msra.mxu0 0.0
    %208 = vmatprep.subr.mxu0 0.0
    %209 = vmatpush2.msra.mxu0 0.0
    %210 = vmatprep.subr.mxu0 0.0
    %211 = vmatpush2.msra.mxu0 0.0
    %212 = vmatprep.subr.mxu0 0.0
    %213 = vmatpush2.msra.mxu0 0.0
    %214 = vmatprep.subr.mxu0 0.0
    %215 = vmatpush2.msra.mxu0 0.0
    %216 = vmatprep.subr.mxu0 0.0
    %217 = vmatpush2.msra.mxu0 0.0
    %218 = vmatprep.subr.mxu0 0.0
    %219 = vmatpush2.msra.mxu0 0.0
    %220 = vmatprep.subr.mxu0 0.0
    %221 = vmatpush2.msra.mxu0 0.0
    %222 = vmatprep.subr.mxu0 0.0
    %223 = vmatpush2.msra.mxu0 0.0
    %224 = vmatprep.subr.mxu0 0.0
    %225 = vmatpush2.msra.mxu0 0.0
    %226 = vmatprep.subr.mxu0 0.0
    %227 = vmatpush2.msra.mxu0 0.0
    %228 = vmatprep.subr.mxu0 0.0
    %229 = vmatpush2.msra.mxu0 0.0
    %230 = vmatprep.subr.mxu0 0.0
    %231 = vmatpush2.msra.mxu0 0.0
    %232 = vmatprep.subr.mxu0 0.0
    %233 = vmatpush2.msra.mxu0 0.0
    %234 = vmatprep.subr.mxu0 0.0
    %235 = vmatpush2.msra.mxu0 0.0
    %236 = vmatprep.mubr.f32.mxu0 0.0
    %237 = vmatmul.mubr.f32.gmra.mxu0 %v97
    %v238 = vpop.f32.mrf.mxu0
    %v239 = vadd.f32 0.0, %v238
    %v240 = vpop.f32.mrf.mxu0
    %241 = vdwg.mxu0
    %v243 = vlaneseq
    %v244 = vshrl.u32 %v243, 7
    %v245 = vsub.s32 0, %v244
    %v246 = vrot.slane %v96, %v245
    %v248 = vadd.f32 %v239, %v246
    %v249 = vadd.f32 %v98, %v168
    %v250 = vxor.u32 %v249, 2147483648
    %v251 = vmul.f32 %v250, 1.442695
    %v252 = vpow.pop %v251
    %v253 = vadd.f32 %v252, 1.0
    %v254 = vrcp.pop %v253
    %v255 = vmul.f32 1.0, %v254
    %v256 = vadd.f32 %v99, %v170
    %v257 = vxor.u32 %v256, 2147483648
    %v258 = vmul.f32 %v257, 1.442695
    %v259 = vpow.pop %v258
    %v260 = vadd.f32 %v259, 1.0
    %v261 = vrcp.pop %v260
    %v262 = vmul.f32 1.0, %v261
    %v263 = vmul.f32 %v255, %v248
    %v264 = vadd.f32 %v100, %v263
    %v265 = vtanh.pop %v264
    %v266 = vsub.f32 1.0, %v262
    %v267 = vmul.f32 %v266, %v265
    %v268 = vmul.f32 %v262, %v97
    %v269 = vadd.f32 %v267, %v268
    %s270 = scalar_lea.vmem [#allocation3], 24
    %v271 = vld [vmem:[%s270] sm:$0xff]
    %v272 = vld [vmem:[%s270 + $0x8] sm:$0xff]
    %v273 = vld [vmem:[%s270 + $0x10] sm:$0xff]
    %274 = vmatprep.subr.mxu0 %v94
    %275 = vmatpush1.msra.mxu0 %v93
    %276 = vmatprep.subr.mxu0 %v91
    %277 = vmatpush1.msra.mxu0 %v90
    %278 = vmatprep.subr.mxu0 %v88
    %279 = vmatpush1.msra.mxu0 %v87
    %280 = vmatprep.subr.mxu0 %v85
    %281 = vmatpush1.msra.mxu0 %v84
    %282 = vmatprep.subr.mxu0 %v82
    %283 = vmatpush1.msra.mxu0 %v81
    %284 = vmatprep.subr.mxu0 %v79
    %285 = vmatpush1.msra.mxu0 %v78
    %286 = vmatprep.subr.mxu0 %v76
    %287 = vmatpush1.msra.mxu0 %v75
    %288 = vmatprep.subr.mxu0 %v73
    %289 = vmatpush1.msra.mxu0 %v72
    %290 = vmatprep.subr.mxu0 %v70
    %291 = vmatpush1.msra.mxu0 %v69
    %292 = vmatprep.subr.mxu0 %v67
    %293 = vmatpush1.msra.mxu0 %v66
    %294 = vmatprep.subr.mxu0 %v64
    %295 = vmatpush1.msra.mxu0 %v63
    %296 = vmatprep.subr.mxu0 %v61
    %297 = vmatpush1.msra.mxu0 %v60
    %298 = vmatprep.subr.mxu0 %v58
    %299 = vmatpush1.msra.mxu0 %v57
    %300 = vmatprep.subr.mxu0 %v55
    %301 = vmatpush1.msra.mxu0 %v54
    %302 = vmatprep.subr.mxu0 %v52
    %303 = vmatpush1.msra.mxu0 %v51
    %304 = vmatprep.subr.mxu0 %v49
    %305 = vmatpush1.msra.mxu0 %v48
    %306 = vmatprep.subr.mxu0 0.0
    %307 = vmatpush2.msra.mxu0 0.0
    %308 = vmatprep.subr.mxu0 0.0
    %309 = vmatpush2.msra.mxu0 0.0
    %310 = vmatprep.subr.mxu0 0.0
    %311 = vmatpush2.msra.mxu0 0.0
    %312 = vmatprep.subr.mxu0 0.0
    %313 = vmatpush2.msra.mxu0 0.0
    %314 = vmatprep.subr.mxu0 0.0
    %315 = vmatpush2.msra.mxu0 0.0
    %316 = vmatprep.subr.mxu0 0.0
    %317 = vmatpush2.msra.mxu0 0.0
    %318 = vmatprep.subr.mxu0 0.0
    %319 = vmatpush2.msra.mxu0 0.0
    %320 = vmatprep.subr.mxu0 0.0
    %321 = vmatpush2.msra.mxu0 0.0
    %322 = vmatprep.subr.mxu0 0.0
    %323 = vmatpush2.msra.mxu0 0.0
    %324 = vmatprep.subr.mxu0 0.0
    %325 = vmatpush2.msra.mxu0 0.0
    %326 = vmatprep.subr.mxu0 0.0
    %327 = vmatpush2.msra.mxu0 0.0
    %328 = vmatprep.subr.mxu0 0.0
    %329 = vmatpush2.msra.mxu0 0.0
    %330 = vmatprep.subr.mxu0 0.0
    %331 = vmatpush2.msra.mxu0 0.0
    %332 = vmatprep.subr.mxu0 0.0
    %333 = vmatpush2.msra.mxu0 0.0
    %334 = vmatprep.subr.mxu0 0.0
    %335 = vmatpush2.msra.mxu0 0.0
    %336 = vmatprep.subr.mxu0 0.0
    %337 = vmatpush2.msra.mxu0 0.0
    %338 = vmatprep.mubr.f32.mxu0 0.0
    %339 = vmatmul.mubr.f32.gmra.mxu0 %v269
    %v340 = vpop.f32.mrf.mxu0
    %v341 = vadd.f32 0.0, %v340
    %v342 = vpop.f32.mrf.mxu0
    %v343 = vadd.f32 0.0, %v342
    %344 = vdwg.mxu0
    %345 = vmatprep.subr.mxu0 0.0
    %346 = vmatpush1.msra.mxu0 %v95
    %347 = vmatprep.subr.mxu0 0.0
    %348 = vmatpush1.msra.mxu0 %v92
    %349 = vmatprep.subr.mxu0 0.0
    %350 = vmatpush1.msra.mxu0 %v89
    %351 = vmatprep.subr.mxu0 0.0
    %352 = vmatpush1.msra.mxu0 %v86
    %353 = vmatprep.subr.mxu0 0.0
    %354 = vmatpush1.msra.mxu0 %v83
    %355 = vmatprep.subr.mxu0 0.0
    %356 = vmatpush1.msra.mxu0 %v80
    %357 = vmatprep.subr.mxu0 0.0
    %358 = vmatpush1.msra.mxu0 %v77
    %359 = vmatprep.subr.mxu0 0.0
    %360 = vmatpush1.msra.mxu0 %v74
    %361 = vmatprep.subr.mxu0 0.0
    %362 = vmatpush1.msra.mxu0 %v71
    %363 = vmatprep.subr.mxu0 0.0
    %364 = vmatpush1.msra.mxu0 %v68
    %365 = vmatprep.subr.mxu0 0.0
    %366 = vmatpush1.msra.mxu0 %v65
    %367 = vmatprep.subr.mxu0 0.0
    %368 = vmatpush1.msra.mxu0 %v62
    %369 = vmatprep.subr.mxu0 0.0
    %370 = vmatpush1.msra.mxu0 %v59
    %371 = vmatprep.subr.mxu0 0.0
    %372 = vmatpush1.msra.mxu0 %v56
    %373 = vmatprep.subr.mxu0 0.0
    %374 = vmatpush1.msra.mxu0 %v53
    %375 = vmatprep.subr.mxu0 0.0
    %376 = vmatpush1.msra.mxu0 %v50
    %377 = vmatprep.subr.mxu0 0.0
    %378 = vmatpush2.msra.mxu0 0.0
    %379 = vmatprep.subr.mxu0 0.0
    %380 = vmatpush2.msra.mxu0 0.0
    %381 = vmatprep.subr.mxu0 0.0
    %382 = vmatpush2.msra.mxu0 0.0
    %383 = vmatprep.subr.mxu0 0.0
    %384 = vmatpush2.msra.mxu0 0.0
    %385 = vmatprep.subr.mxu0 0.0
    %386 = vmatpush2.msra.mxu0 0.0
    %387 = vmatprep.subr.mxu0 0.0
    %388 = vmatpush2.msra.mxu0 0.0
    %389 = vmatprep.subr.mxu0 0.0
    %390 = vmatpush2.msra.mxu0 0.0
    %391 = vmatprep.subr.mxu0 0.0
    %392 = vmatpush2.msra.mxu0 0.0
    %393 = vmatprep.subr.mxu0 0.0
    %394 = vmatpush2.msra.mxu0 0.0
    %395 = vmatprep.subr.mxu0 0.0
    %396 = vmatpush2.msra.mxu0 0.0
    %397 = vmatprep.subr.mxu0 0.0
    %398 = vmatpush2.msra.mxu0 0.0
    %399 = vmatprep.subr.mxu0 0.0
    %400 = vmatpush2.msra.mxu0 0.0
    %401 = vmatprep.subr.mxu0 0.0
    %402 = vmatpush2.msra.mxu0 0.0
    %403 = vmatprep.subr.mxu0 0.0
    %404 = vmatpush2.msra.mxu0 0.0
    %405 = vmatprep.subr.mxu0 0.0
    %406 = vmatpush2.msra.mxu0 0.0
    %407 = vmatprep.subr.mxu0 0.0
    %408 = vmatpush2.msra.mxu0 0.0
    %409 = vmatprep.mubr.f32.mxu0 0.0
    %410 = vmatmul.mubr.f32.gmra.mxu0 %v269
    %v411 = vpop.f32.mrf.mxu0
    %v412 = vadd.f32 0.0, %v411
    %v413 = vpop.f32.mrf.mxu0
    %414 = vdwg.mxu0
    %v415 = vadd.f32 %v412, %v246
    %v416 = vadd.f32 %v271, %v341
    %v417 = vxor.u32 %v416, 2147483648
    %v418 = vmul.f32 %v417, 1.442695
    %v419 = vpow.pop %v418
    %v420 = vadd.f32 %v419, 1.0
    %v421 = vrcp.pop %v420
    %v422 = vmul.f32 1.0, %v421
    %v423 = vadd.f32 %v272, %v343
    %v424 = vxor.u32 %v423, 2147483648
    %v425 = vmul.f32 %v424, 1.442695
    %v426 = vpow.pop %v425
    %v427 = vadd.f32 %v426, 1.0
    %v428 = vrcp.pop %v427
    %v429 = vmul.f32 1.0, %v428
    %v430 = vmul.f32 %v422, %v415
    %v431 = vadd.f32 %v273, %v430
    %v432 = vtanh.pop %v431
    %v433 = vsub.f32 1.0, %v429
    %v434 = vmul.f32 %v433, %v432
    %v435 = vmul.f32 %v429, %v269
    %v436 = vadd.f32 %v434, %v435
    %s437 = scalar_lea.vmem [#allocation3], 48
    %v438 = vld [vmem:[%s437] sm:$0xff]
    %v439 = vld [vmem:[%s437 + $0x8] sm:$0xff]
    %v440 = vld [vmem:[%s437 + $0x10] sm:$0xff]
    %441 = vmatprep.subr.mxu0 %v94
    %442 = vmatpush1.msra.mxu0 %v93
    %443 = vmatprep.subr.mxu0 %v91
    %444 = vmatpush1.msra.mxu0 %v90
    %445 = vmatprep.subr.mxu0 %v88
    %446 = vmatpush1.msra.mxu0 %v87
    %447 = vmatprep.subr.mxu0 %v85
    %448 = vmatpush1.msra.mxu0 %v84
    %449 = vmatprep.subr.mxu0 %v82
    %450 = vmatpush1.msra.mxu0 %v81
    %451 = vmatprep.subr.mxu0 %v79
    %452 = vmatpush1.msra.mxu0 %v78
    %453 = vmatprep.subr.mxu0 %v76
    %454 = vmatpush1.msra.mxu0 %v75
    %455 = vmatprep.subr.mxu0 %v73
    %456 = vmatpush1.msra.mxu0 %v72
    %457 = vmatprep.subr.mxu0 %v70
    %458 = vmatpush1.msra.mxu0 %v69
    %459 = vmatprep.subr.mxu0 %v67
    %460 = vmatpush1.msra.mxu0 %v66
    %461 = vmatprep.subr.mxu0 %v64
    %462 = vmatpush1.msra.mxu0 %v63
    %463 = vmatprep.subr.mxu0 %v61
    %464 = vmatpush1.msra.mxu0 %v60
    %465 = vmatprep.subr.mxu0 %v58
    %466 = vmatpush1.msra.mxu0 %v57
    %467 = vmatprep.subr.mxu0 %v55
    %468 = vmatpush1.msra.mxu0 %v54
    %469 = vmatprep.subr.mxu0 %v52
    %470 = vmatpush1.msra.mxu0 %v51
    %471 = vmatprep.subr.mxu0 %v49
    %472 = vmatpush1.msra.mxu0 %v48
    %473 = vmatprep.subr.mxu0 0.0
    %474 = vmatpush2.msra.mxu0 0.0
    %475 = vmatprep.subr.mxu0 0.0
    %476 = vmatpush2.msra.mxu0 0.0
    %477 = vmatprep.subr.mxu0 0.0
    %478 = vmatpush2.msra.mxu0 0.0
    %479 = vmatprep.subr.mxu0 0.0
    %480 = vmatpush2.msra.mxu0 0.0
    %481 = vmatprep.subr.mxu0 0.0
    %482 = vmatpush2.msra.mxu0 0.0
    %483 = vmatprep.subr.mxu0 0.0
    %484 = vmatpush2.msra.mxu0 0.0
    %485 = vmatprep.subr.mxu0 0.0
    %486 = vmatpush2.msra.mxu0 0.0
    %487 = vmatprep.subr.mxu0 0.0
    %488 = vmatpush2.msra.mxu0 0.0
    %489 = vmatprep.subr.mxu0 0.0
    %490 = vmatpush2.msra.mxu0 0.0
    %491 = vmatprep.subr.mxu0 0.0
    %492 = vmatpush2.msra.mxu0 0.0
    %493 = vmatprep.subr.mxu0 0.0
    %494 = vmatpush2.msra.mxu0 0.0
    %495 = vmatprep.subr.mxu0 0.0
    %496 = vmatpush2.msra.mxu0 0.0
    %497 = vmatprep.subr.mxu0 0.0
    %498 = vmatpush2.msra.mxu0 0.0
    %499 = vmatprep.subr.mxu0 0.0
    %500 = vmatpush2.msra.mxu0 0.0
    %501 = vmatprep.subr.mxu0 0.0
    %502 = vmatpush2.msra.mxu0 0.0
    %503 = vmatprep.subr.mxu0 0.0
    %504 = vmatpush2.msra.mxu0 0.0
    %505 = vmatprep.mubr.f32.mxu0 0.0
    %506 = vmatmul.mubr.f32.gmra.mxu0 %v436
    %v507 = vpop.f32.mrf.mxu0
    %v508 = vadd.f32 0.0, %v507
    %v509 = vpop.f32.mrf.mxu0
    %v510 = vadd.f32 0.0, %v509
    %511 = vdwg.mxu0
    %512 = vmatprep.subr.mxu0 0.0
    %513 = vmatpush1.msra.mxu0 %v95
    %514 = vmatprep.subr.mxu0 0.0
    %515 = vmatpush1.msra.mxu0 %v92
    %516 = vmatprep.subr.mxu0 0.0
    %517 = vmatpush1.msra.mxu0 %v89
    %518 = vmatprep.subr.mxu0 0.0
    %519 = vmatpush1.msra.mxu0 %v86
    %520 = vmatprep.subr.mxu0 0.0
    %521 = vmatpush1.msra.mxu0 %v83
    %522 = vmatprep.subr.mxu0 0.0
    %523 = vmatpush1.msra.mxu0 %v80
    %524 = vmatprep.subr.mxu0 0.0
    %525 = vmatpush1.msra.mxu0 %v77
    %526 = vmatprep.subr.mxu0 0.0
    %527 = vmatpush1.msra.mxu0 %v74
    %528 = vmatprep.subr.mxu0 0.0
    %529 = vmatpush1.msra.mxu0 %v71
    %530 = vmatprep.subr.mxu0 0.0
    %531 = vmatpush1.msra.mxu0 %v68
    %532 = vmatprep.subr.mxu0 0.0
    %533 = vmatpush1.msra.mxu0 %v65
    %534 = vmatprep.subr.mxu0 0.0
    %535 = vmatpush1.msra.mxu0 %v62
    %536 = vmatprep.subr.mxu0 0.0
    %537 = vmatpush1.msra.mxu0 %v59
    %538 = vmatprep.subr.mxu0 0.0
    %539 = vmatpush1.msra.mxu0 %v56
    %540 = vmatprep.subr.mxu0 0.0
    %541 = vmatpush1.msra.mxu0 %v53
    %542 = vmatprep.subr.mxu0 0.0
    %543 = vmatpush1.msra.mxu0 %v50
    %544 = vmatprep.subr.mxu0 0.0
    %545 = vmatpush2.msra.mxu0 0.0
    %546 = vmatprep.subr.mxu0 0.0
    %547 = vmatpush2.msra.mxu0 0.0
    %548 = vmatprep.subr.mxu0 0.0
    %549 = vmatpush2.msra.mxu0 0.0
    %550 = vmatprep.subr.mxu0 0.0
    %551 = vmatpush2.msra.mxu0 0.0
    %552 = vmatprep.subr.mxu0 0.0
    %553 = vmatpush2.msra.mxu0 0.0
    %554 = vmatprep.subr.mxu0 0.0
    %555 = vmatpush2.msra.mxu0 0.0
    %556 = vmatprep.subr.mxu0 0.0
    %557 = vmatpush2.msra.mxu0 0.0
    %558 = vmatprep.subr.mxu0 0.0
    %559 = vmatpush2.msra.mxu0 0.0
    %560 = vmatprep.subr.mxu0 0.0
    %561 = vmatpush2.msra.mxu0 0.0
    %562 = vmatprep.subr.mxu0 0.0
    %563 = vmatpush2.msra.mxu0 0.0
    %564 = vmatprep.subr.mxu0 0.0
    %565 = vmatpush2.msra.mxu0 0.0
    %566 = vmatprep.subr.mxu0 0.0
    %567 = vmatpush2.msra.mxu0 0.0
    %568 = vmatprep.subr.mxu0 0.0
    %569 = vmatpush2.msra.mxu0 0.0
    %570 = vmatprep.subr.mxu0 0.0
    %571 = vmatpush2.msra.mxu0 0.0
    %572 = vmatprep.subr.mxu0 0.0
    %573 = vmatpush2.msra.mxu0 0.0
    %574 = vmatprep.subr.mxu0 0.0
    %575 = vmatpush2.msra.mxu0 0.0
    %576 = vmatprep.mubr.f32.mxu0 0.0
    %577 = vmatmul.mubr.f32.gmra.mxu0 %v436
    %v578 = vpop.f32.mrf.mxu0
    %v579 = vadd.f32 0.0, %v578
    %v580 = vpop.f32.mrf.mxu0
    %581 = vdwg.mxu0
    %v582 = vadd.f32 %v579, %v246
    %v583 = vadd.f32 %v438, %v508
    %v584 = vxor.u32 %v583, 2147483648
    %v585 = vmul.f32 %v584, 1.442695
    %v586 = vpow.pop %v585
    %v587 = vadd.f32 %v586, 1.0
    %v588 = vrcp.pop %v587
    %v589 = vmul.f32 1.0, %v588
    %v590 = vadd.f32 %v439, %v510
    %v591 = vxor.u32 %v590, 2147483648
    %v592 = vmul.f32 %v591, 1.442695
    %v593 = vpow.pop %v592
    %v594 = vadd.f32 %v593, 1.0
    %v595 = vrcp.pop %v594
    %v596 = vmul.f32 1.0, %v595
    %v597 = vmul.f32 %v589, %v582
    %v598 = vadd.f32 %v440, %v597
    %v599 = vtanh.pop %v598
    %v600 = vsub.f32 1.0, %v596
    %v601 = vmul.f32 %v600, %v599
    %v602 = vmul.f32 %v596, %v436
    %v603 = vadd.f32 %v601, %v602
    %s604 = scalar_lea.vmem [#allocation3], 72
    %v605 = vld [vmem:[%s604] sm:$0xff]
    %v606 = vld [vmem:[%s604 + $0x8] sm:$0xff]
    %v607 = vld [vmem:[%s604 + $0x10] sm:$0xff]
    %608 = vmatprep.subr.mxu0 %v94
    %609 = vmatpush1.msra.mxu0 %v93
    %610 = vmatprep.subr.mxu0 %v91
    %611 = vmatpush1.msra.mxu0 %v90
    %612 = vmatprep.subr.mxu0 %v88
    %613 = vmatpush1.msra.mxu0 %v87
    %614 = vmatprep.subr.mxu0 %v85
    %615 = vmatpush1.msra.mxu0 %v84
    %616 = vmatprep.subr.mxu0 %v82
    %617 = vmatpush1.msra.mxu0 %v81
    %618 = vmatprep.subr.mxu0 %v79
    %619 = vmatpush1.msra.mxu0 %v78
    %620 = vmatprep.subr.mxu0 %v76
    %621 = vmatpush1.msra.mxu0 %v75
    %622 = vmatprep.subr.mxu0 %v73
    %623 = vmatpush1.msra.mxu0 %v72
    %624 = vmatprep.subr.mxu0 %v70
    %625 = vmatpush1.msra.mxu0 %v69
    %626 = vmatprep.subr.mxu0 %v67
    %627 = vmatpush1.msra.mxu0 %v66
    %628 = vmatprep.subr.mxu0 %v64
    %629 = vmatpush1.msra.mxu0 %v63
    %630 = vmatprep.subr.mxu0 %v61
    %631 = vmatpush1.msra.mxu0 %v60
    %632 = vmatprep.subr.mxu0 %v58
    %633 = vmatpush1.msra.mxu0 %v57
    %634 = vmatprep.subr.mxu0 %v55
    %635 = vmatpush1.msra.mxu0 %v54
    %636 = vmatprep.subr.mxu0 %v52
    %637 = vmatpush1.msra.mxu0 %v51
    %638 = vmatprep.subr.mxu0 %v49
    %639 = vmatpush1.msra.mxu0 %v48
    %640 = vmatprep.subr.mxu0 0.0
    %641 = vmatpush2.msra.mxu0 0.0
    %642 = vmatprep.subr.mxu0 0.0
    %643 = vmatpush2.msra.mxu0 0.0
    %644 = vmatprep.subr.mxu0 0.0
    %645 = vmatpush2.msra.mxu0 0.0
    %646 = vmatprep.subr.mxu0 0.0
    %647 = vmatpush2.msra.mxu0 0.0
    %648 = vmatprep.subr.mxu0 0.0
    %649 = vmatpush2.msra.mxu0 0.0
    %650 = vmatprep.subr.mxu0 0.0
    %651 = vmatpush2.msra.mxu0 0.0
    %652 = vmatprep.subr.mxu0 0.0
    %653 = vmatpush2.msra.mxu0 0.0
    %654 = vmatprep.subr.mxu0 0.0
    %655 = vmatpush2.msra.mxu0 0.0
    %656 = vmatprep.subr.mxu0 0.0
    %657 = vmatpush2.msra.mxu0 0.0
    %658 = vmatprep.subr.mxu0 0.0
    %659 = vmatpush2.msra.mxu0 0.0
    %660 = vmatprep.subr.mxu0 0.0
    %661 = vmatpush2.msra.mxu0 0.0
    %662 = vmatprep.subr.mxu0 0.0
    %663 = vmatpush2.msra.mxu0 0.0
    %664 = vmatprep.subr.mxu0 0.0
    %665 = vmatpush2.msra.mxu0 0.0
    %666 = vmatprep.subr.mxu0 0.0
    %667 = vmatpush2.msra.mxu0 0.0
    %668 = vmatprep.subr.mxu0 0.0
    %669 = vmatpush2.msra.mxu0 0.0
    %670 = vmatprep.subr.mxu0 0.0
    %671 = vmatpush2.msra.mxu0 0.0
    %672 = vmatprep.mubr.f32.mxu0 0.0
    %673 = vmatmul.mubr.f32.gmra.mxu0 %v603
    %v674 = vpop.f32.mrf.mxu0
    %v675 = vadd.f32 0.0, %v674
    %v676 = vpop.f32.mrf.mxu0
    %v677 = vadd.f32 0.0, %v676
    %678 = vdwg.mxu0
    %679 = vmatprep.subr.mxu0 0.0
    %680 = vmatpush1.msra.mxu0 %v95
    %681 = vmatprep.subr.mxu0 0.0
    %682 = vmatpush1.msra.mxu0 %v92
    %683 = vmatprep.subr.mxu0 0.0
    %684 = vmatpush1.msra.mxu0 %v89
    %685 = vmatprep.subr.mxu0 0.0
    %686 = vmatpush1.msra.mxu0 %v86
    %687 = vmatprep.subr.mxu0 0.0
    %688 = vmatpush1.msra.mxu0 %v83
    %689 = vmatprep.subr.mxu0 0.0
    %690 = vmatpush1.msra.mxu0 %v80
    %691 = vmatprep.subr.mxu0 0.0
    %692 = vmatpush1.msra.mxu0 %v77
    %693 = vmatprep.subr.mxu0 0.0
    %694 = vmatpush1.msra.mxu0 %v74
    %695 = vmatprep.subr.mxu0 0.0
    %696 = vmatpush1.msra.mxu0 %v71
    %697 = vmatprep.subr.mxu0 0.0
    %698 = vmatpush1.msra.mxu0 %v68
    %699 = vmatprep.subr.mxu0 0.0
    %700 = vmatpush1.msra.mxu0 %v65
    %701 = vmatprep.subr.mxu0 0.0
    %702 = vmatpush1.msra.mxu0 %v62
    %703 = vmatprep.subr.mxu0 0.0
    %704 = vmatpush1.msra.mxu0 %v59
    %705 = vmatprep.subr.mxu0 0.0
    %706 = vmatpush1.msra.mxu0 %v56
    %707 = vmatprep.subr.mxu0 0.0
    %708 = vmatpush1.msra.mxu0 %v53
    %709 = vmatprep.subr.mxu0 0.0
    %710 = vmatpush1.msra.mxu0 %v50
    %711 = vmatprep.subr.mxu0 0.0
    %712 = vmatpush2.msra.mxu0 0.0
    %713 = vmatprep.subr.mxu0 0.0
    %714 = vmatpush2.msra.mxu0 0.0
    %715 = vmatprep.subr.mxu0 0.0
    %716 = vmatpush2.msra.mxu0 0.0
    %717 = vmatprep.subr.mxu0 0.0
    %718 = vmatpush2.msra.mxu0 0.0
    %719 = vmatprep.subr.mxu0 0.0
    %720 = vmatpush2.msra.mxu0 0.0
    %721 = vmatprep.subr.mxu0 0.0
    %722 = vmatpush2.msra.mxu0 0.0
    %723 = vmatprep.subr.mxu0 0.0
    %724 = vmatpush2.msra.mxu0 0.0
    %725 = vmatprep.subr.mxu0 0.0
    %726 = vmatpush2.msra.mxu0 0.0
    %727 = vmatprep.subr.mxu0 0.0
    %728 = vmatpush2.msra.mxu0 0.0
    %729 = vmatprep.subr.mxu0 0.0
    %730 = vmatpush2.msra.mxu0 0.0
    %731 = vmatprep.subr.mxu0 0.0
    %732 = vmatpush2.msra.mxu0 0.0
    %733 = vmatprep.subr.mxu0 0.0
    %734 = vmatpush2.msra.mxu0 0.0
    %735 = vmatprep.subr.mxu0 0.0
    %736 = vmatpush2.msra.mxu0 0.0
    %737 = vmatprep.subr.mxu0 0.0
    %738 = vmatpush2.msra.mxu0 0.0
    %739 = vmatprep.subr.mxu0 0.0
    %740 = vmatpush2.msra.mxu0 0.0
    %741 = vmatprep.subr.mxu0 0.0
    %742 = vmatpush2.msra.mxu0 0.0
    %743 = vmatprep.mubr.f32.mxu0 0.0
    %744 = vmatmul.mubr.f32.gmra.mxu0 %v603
    %v745 = vpop.f32.mrf.mxu0
    %v746 = vadd.f32 0.0, %v745
    %v747 = vpop.f32.mrf.mxu0
    %748 = vdwg.mxu0
    %v749 = vadd.f32 %v746, %v246
    %v750 = vadd.f32 %v605, %v675
    %v751 = vxor.u32 %v750, 2147483648
    %v752 = vmul.f32 %v751, 1.442695
    %v753 = vpow.pop %v752
    %v754 = vadd.f32 %v753, 1.0
    %v755 = vrcp.pop %v754
    %v756 = vmul.f32 1.0, %v755
    %v757 = vadd.f32 %v606, %v677
    %v758 = vxor.u32 %v757, 2147483648
    %v759 = vmul.f32 %v758, 1.442695
    %v760 = vpow.pop %v759
    %v761 = vadd.f32 %v760, 1.0
    %v762 = vrcp.pop %v761
    %v763 = vmul.f32 1.0, %v762
    %v764 = vmul.f32 %v756, %v749
    %v765 = vadd.f32 %v607, %v764
    %v766 = vtanh.pop %v765
    %v767 = vsub.f32 1.0, %v763
    %v768 = vmul.f32 %v767, %v766
    %v769 = vmul.f32 %v763, %v603
    %v770 = vadd.f32 %v768, %v769
    %s771 = scalar_lea.vmem [#allocation3], 96
    %v772 = vld [vmem:[%s771] sm:$0xff]
    %v773 = vld [vmem:[%s771 + $0x8] sm:$0xff]
    %v774 = vld [vmem:[%s771 + $0x10] sm:$0xff]
    %775 = vmatprep.subr.mxu0 %v94
    %776 = vmatpush1.msra.mxu0 %v93
    %777 = vmatprep.subr.mxu0 %v91
    %778 = vmatpush1.msra.mxu0 %v90
    %779 = vmatprep.subr.mxu0 %v88
    %780 = vmatpush1.msra.mxu0 %v87
    %781 = vmatprep.subr.mxu0 %v85
    %782 = vmatpush1.msra.mxu0 %v84
    %783 = vmatprep.subr.mxu0 %v82
    %784 = vmatpush1.msra.mxu0 %v81
    %785 = vmatprep.subr.mxu0 %v79
    %786 = vmatpush1.msra.mxu0 %v78
    %787 = vmatprep.subr.mxu0 %v76
    %788 = vmatpush1.msra.mxu0 %v75
    %789 = vmatprep.subr.mxu0 %v73
    %790 = vmatpush1.msra.mxu0 %v72
    %791 = vmatprep.subr.mxu0 %v70
    %792 = vmatpush1.msra.mxu0 %v69
    %793 = vmatprep.subr.mxu0 %v67
    %794 = vmatpush1.msra.mxu0 %v66
    %795 = vmatprep.subr.mxu0 %v64
    %796 = vmatpush1.msra.mxu0 %v63
    %797 = vmatprep.subr.mxu0 %v61
    %798 = vmatpush1.msra.mxu0 %v60
    %799 = vmatprep.subr.mxu0 %v58
    %800 = vmatpush1.msra.mxu0 %v57
    %801 = vmatprep.subr.mxu0 %v55
    %802 = vmatpush1.msra.mxu0 %v54
    %803 = vmatprep.subr.mxu0 %v52
    %804 = vmatpush1.msra.mxu0 %v51
    %805 = vmatprep.subr.mxu0 %v49
    %806 = vmatpush1.msra.mxu0 %v48
    %807 = vmatprep.subr.mxu0 0.0
    %808 = vmatpush2.msra.mxu0 0.0
    %809 = vmatprep.subr.mxu0 0.0
    %810 = vmatpush2.msra.mxu0 0.0
    %811 = vmatprep.subr.mxu0 0.0
    %812 = vmatpush2.msra.mxu0 0.0
    %813 = vmatprep.subr.mxu0 0.0
    %814 = vmatpush2.msra.mxu0 0.0
    %815 = vmatprep.subr.mxu0 0.0
    %816 = vmatpush2.msra.mxu0 0.0
    %817 = vmatprep.subr.mxu0 0.0
    %818 = vmatpush2.msra.mxu0 0.0
    %819 = vmatprep.subr.mxu0 0.0
    %820 = vmatpush2.msra.mxu0 0.0
    %821 = vmatprep.subr.mxu0 0.0
    %822 = vmatpush2.msra.mxu0 0.0
    %823 = vmatprep.subr.mxu0 0.0
    %824 = vmatpush2.msra.mxu0 0.0
    %825 = vmatprep.subr.mxu0 0.0
    %826 = vmatpush2.msra.mxu0 0.0
    %827 = vmatprep.subr.mxu0 0.0
    %828 = vmatpush2.msra.mxu0 0.0
    %829 = vmatprep.subr.mxu0 0.0
    %830 = vmatpush2.msra.mxu0 0.0
    %831 = vmatprep.subr.mxu0 0.0
    %832 = vmatpush2.msra.mxu0 0.0
    %833 = vmatprep.subr.mxu0 0.0
    %834 = vmatpush2.msra.mxu0 0.0
    %835 = vmatprep.subr.mxu0 0.0
    %836 = vmatpush2.msra.mxu0 0.0
    %837 = vmatprep.subr.mxu0 0.0
    %838 = vmatpush2.msra.mxu0 0.0
    %839 = vmatprep.mubr.f32.mxu0 0.0
    %840 = vmatmul.mubr.f32.gmra.mxu0 %v770
    %v841 = vpop.f32.mrf.mxu0
    %v842 = vadd.f32 0.0, %v841
    %v843 = vpop.f32.mrf.mxu0
    %v844 = vadd.f32 0.0, %v843
    %845 = vdwg.mxu0
    %846 = vmatprep.subr.mxu0 0.0
    %847 = vmatpush1.msra.mxu0 %v95
    %848 = vmatprep.subr.mxu0 0.0
    %849 = vmatpush1.msra.mxu0 %v92
    %850 = vmatprep.subr.mxu0 0.0
    %851 = vmatpush1.msra.mxu0 %v89
    %852 = vmatprep.subr.mxu0 0.0
    %853 = vmatpush1.msra.mxu0 %v86
    %854 = vmatprep.subr.mxu0 0.0
    %855 = vmatpush1.msra.mxu0 %v83
    %856 = vmatprep.subr.mxu0 0.0
    %857 = vmatpush1.msra.mxu0 %v80
    %858 = vmatprep.subr.mxu0 0.0
    %859 = vmatpush1.msra.mxu0 %v77
    %860 = vmatprep.subr.mxu0 0.0
    %861 = vmatpush1.msra.mxu0 %v74
    %862 = vmatprep.subr.mxu0 0.0
    %863 = vmatpush1.msra.mxu0 %v71
    %864 = vmatprep.subr.mxu0 0.0
    %865 = vmatpush1.msra.mxu0 %v68
    %866 = vmatprep.subr.mxu0 0.0
    %867 = vmatpush1.msra.mxu0 %v65
    %868 = vmatprep.subr.mxu0 0.0
    %869 = vmatpush1.msra.mxu0 %v62
    %870 = vmatprep.subr.mxu0 0.0
    %871 = vmatpush1.msra.mxu0 %v59
    %872 = vmatprep.subr.mxu0 0.0
    %873 = vmatpush1.msra.mxu0 %v56
    %874 = vmatprep.subr.mxu0 0.0
    %875 = vmatpush1.msra.mxu0 %v53
    %876 = vmatprep.subr.mxu0 0.0
    %877 = vmatpush1.msra.mxu0 %v50
    %878 = vmatprep.subr.mxu0 0.0
    %879 = vmatpush2.msra.mxu0 0.0
    %880 = vmatprep.subr.mxu0 0.0
    %881 = vmatpush2.msra.mxu0 0.0
    %882 = vmatprep.subr.mxu0 0.0
    %883 = vmatpush2.msra.mxu0 0.0
    %884 = vmatprep.subr.mxu0 0.0
    %885 = vmatpush2.msra.mxu0 0.0
    %886 = vmatprep.subr.mxu0 0.0
    %887 = vmatpush2.msra.mxu0 0.0
    %888 = vmatprep.subr.mxu0 0.0
    %889 = vmatpush2.msra.mxu0 0.0
    %890 = vmatprep.subr.mxu0 0.0
    %891 = vmatpush2.msra.mxu0 0.0
    %892 = vmatprep.subr.mxu0 0.0
    %893 = vmatpush2.msra.mxu0 0.0
    %894 = vmatprep.subr.mxu0 0.0
    %895 = vmatpush2.msra.mxu0 0.0
    %896 = vmatprep.subr.mxu0 0.0
    %897 = vmatpush2.msra.mxu0 0.0
    %898 = vmatprep.subr.mxu0 0.0
    %899 = vmatpush2.msra.mxu0 0.0
    %900 = vmatprep.subr.mxu0 0.0
    %901 = vmatpush2.msra.mxu0 0.0
    %902 = vmatprep.subr.mxu0 0.0
    %903 = vmatpush2.msra.mxu0 0.0
    %904 = vmatprep.subr.mxu0 0.0
    %905 = vmatpush2.msra.mxu0 0.0
    %906 = vmatprep.subr.mxu0 0.0
    %907 = vmatpush2.msra.mxu0 0.0
    %908 = vmatprep.subr.mxu0 0.0
    %909 = vmatpush2.msra.mxu0 0.0
    %910 = vmatprep.mubr.f32.mxu0 0.0
    %911 = vmatmul.mubr.f32.gmra.mxu0 %v770
    %v912 = vpop.f32.mrf.mxu0
    %v913 = vadd.f32 0.0, %v912
    %v914 = vpop.f32.mrf.mxu0
    %915 = vdwg.mxu0
    %v916 = vadd.f32 %v913, %v246
    %v917 = vadd.f32 %v772, %v842
    %v918 = vxor.u32 %v917, 2147483648
    %v919 = vmul.f32 %v918, 1.442695
    %v920 = vpow.pop %v919
    %v921 = vadd.f32 %v920, 1.0
    %v922 = vrcp.pop %v921
    %v923 = vmul.f32 1.0, %v922
    %v924 = vadd.f32 %v773, %v844
    %v925 = vxor.u32 %v924, 2147483648
    %v926 = vmul.f32 %v925, 1.442695
    %v927 = vpow.pop %v926
    %v928 = vadd.f32 %v927, 1.0
    %v929 = vrcp.pop %v928
    %v930 = vmul.f32 1.0, %v929
    %v931 = vmul.f32 %v923, %v916
    %v932 = vadd.f32 %v774, %v931
    %v933 = vtanh.pop %v932
    %v934 = vsub.f32 1.0, %v930
    %v935 = vmul.f32 %v934, %v933
    %v936 = vmul.f32 %v930, %v770
    %v937 = vadd.f32 %v935, %v936
    %s938 = scalar_lea.vmem [#allocation3], 120
    %v939 = vld [vmem:[%s938] sm:$0xff]
    %v940 = vld [vmem:[%s938 + $0x8] sm:$0xff]
    %v941 = vld [vmem:[%s938 + $0x10] sm:$0xff]
    %942 = vmatprep.subr.mxu0 %v94
    %943 = vmatpush1.msra.mxu0 %v93
    %944 = vmatprep.subr.mxu0 %v91
    %945 = vmatpush1.msra.mxu0 %v90
    %946 = vmatprep.subr.mxu0 %v88
    %947 = vmatpush1.msra.mxu0 %v87
    %948 = vmatprep.subr.mxu0 %v85
    %949 = vmatpush1.msra.mxu0 %v84
    %950 = vmatprep.subr.mxu0 %v82
    %951 = vmatpush1.msra.mxu0 %v81
    %952 = vmatprep.subr.mxu0 %v79
    %953 = vmatpush1.msra.mxu0 %v78
    %954 = vmatprep.subr.mxu0 %v76
    %955 = vmatpush1.msra.mxu0 %v75
    %956 = vmatprep.subr.mxu0 %v73
    %957 = vmatpush1.msra.mxu0 %v72
    %958 = vmatprep.subr.mxu0 %v70
    %959 = vmatpush1.msra.mxu0 %v69
    %960 = vmatprep.subr.mxu0 %v67
    %961 = vmatpush1.msra.mxu0 %v66
    %962 = vmatprep.subr.mxu0 %v64
    %963 = vmatpush1.msra.mxu0 %v63
    %964 = vmatprep.subr.mxu0 %v61
    %965 = vmatpush1.msra.mxu0 %v60
    %966 = vmatprep.subr.mxu0 %v58
    %967 = vmatpush1.msra.mxu0 %v57
    %968 = vmatprep.subr.mxu0 %v55
    %969 = vmatpush1.msra.mxu0 %v54
    %970 = vmatprep.subr.mxu0 %v52
    %971 = vmatpush1.msra.mxu0 %v51
    %972 = vmatprep.subr.mxu0 %v49
    %973 = vmatpush1.msra.mxu0 %v48
    %974 = vmatprep.subr.mxu0 0.0
    %975 = vmatpush2.msra.mxu0 0.0
    %976 = vmatprep.subr.mxu0 0.0
    %977 = vmatpush2.msra.mxu0 0.0
    %978 = vmatprep.subr.mxu0 0.0
    %979 = vmatpush2.msra.mxu0 0.0
    %980 = vmatprep.subr.mxu0 0.0
    %981 = vmatpush2.msra.mxu0 0.0
    %982 = vmatprep.subr.mxu0 0.0
    %983 = vmatpush2.msra.mxu0 0.0
    %984 = vmatprep.subr.mxu0 0.0
    %985 = vmatpush2.msra.mxu0 0.0
    %986 = vmatprep.subr.mxu0 0.0
    %987 = vmatpush2.msra.mxu0 0.0
    %988 = vmatprep.subr.mxu0 0.0
    %989 = vmatpush2.msra.mxu0 0.0
    %990 = vmatprep.subr.mxu0 0.0
    %991 = vmatpush2.msra.mxu0 0.0
    %992 = vmatprep.subr.mxu0 0.0
    %993 = vmatpush2.msra.mxu0 0.0
    %994 = vmatprep.subr.mxu0 0.0
    %995 = vmatpush2.msra.mxu0 0.0
    %996 = vmatprep.subr.mxu0 0.0
    %997 = vmatpush2.msra.mxu0 0.0
    %998 = vmatprep.subr.mxu0 0.0
    %999 = vmatpush2.msra.mxu0 0.0
    %1000 = vmatprep.subr.mxu0 0.0
    %1001 = vmatpush2.msra.mxu0 0.0
    %1002 = vmatprep.subr.mxu0 0.0
    %1003 = vmatpush2.msra.mxu0 0.0
    %1004 = vmatprep.subr.mxu0 0.0
    %1005 = vmatpush2.msra.mxu0 0.0
    %1006 = vmatprep.mubr.f32.mxu0 0.0
    %1007 = vmatmul.mubr.f32.gmra.mxu0 %v937
    %v1008 = vpop.f32.mrf.mxu0
    %v1009 = vadd.f32 0.0, %v1008
    %v1010 = vpop.f32.mrf.mxu0
    %v1011 = vadd.f32 0.0, %v1010
    %1012 = vdwg.mxu0
    %1013 = vmatprep.subr.mxu0 0.0
    %1014 = vmatpush1.msra.mxu0 %v95
    %1015 = vmatprep.subr.mxu0 0.0
    %1016 = vmatpush1.msra.mxu0 %v92
    %1017 = vmatprep.subr.mxu0 0.0
    %1018 = vmatpush1.msra.mxu0 %v89
    %1019 = vmatprep.subr.mxu0 0.0
    %1020 = vmatpush1.msra.mxu0 %v86
    %1021 = vmatprep.subr.mxu0 0.0
    %1022 = vmatpush1.msra.mxu0 %v83
    %1023 = vmatprep.subr.mxu0 0.0
    %1024 = vmatpush1.msra.mxu0 %v80
    %1025 = vmatprep.subr.mxu0 0.0
    %1026 = vmatpush1.msra.mxu0 %v77
    %1027 = vmatprep.subr.mxu0 0.0
    %1028 = vmatpush1.msra.mxu0 %v74
    %1029 = vmatprep.subr.mxu0 0.0
    %1030 = vmatpush1.msra.mxu0 %v71
    %1031 = vmatprep.subr.mxu0 0.0
    %1032 = vmatpush1.msra.mxu0 %v68
    %1033 = vmatprep.subr.mxu0 0.0
    %1034 = vmatpush1.msra.mxu0 %v65
    %1035 = vmatprep.subr.mxu0 0.0
    %1036 = vmatpush1.msra.mxu0 %v62
    %1037 = vmatprep.subr.mxu0 0.0
    %1038 = vmatpush1.msra.mxu0 %v59
    %1039 = vmatprep.subr.mxu0 0.0
    %1040 = vmatpush1.msra.mxu0 %v56
    %1041 = vmatprep.subr.mxu0 0.0
    %1042 = vmatpush1.msra.mxu0 %v53
    %1043 = vmatprep.subr.mxu0 0.0
    %1044 = vmatpush1.msra.mxu0 %v50
    %1045 = vmatprep.subr.mxu0 0.0
    %1046 = vmatpush2.msra.mxu0 0.0
    %1047 = vmatprep.subr.mxu0 0.0
    %1048 = vmatpush2.msra.mxu0 0.0
    %1049 = vmatprep.subr.mxu0 0.0
    %1050 = vmatpush2.msra.mxu0 0.0
    %1051 = vmatprep.subr.mxu0 0.0
    %1052 = vmatpush2.msra.mxu0 0.0
    %1053 = vmatprep.subr.mxu0 0.0
    %1054 = vmatpush2.msra.mxu0 0.0
    %1055 = vmatprep.subr.mxu0 0.0
    %1056 = vmatpush2.msra.mxu0 0.0
    %1057 = vmatprep.subr.mxu0 0.0
    %1058 = vmatpush2.msra.mxu0 0.0
    %1059 = vmatprep.subr.mxu0 0.0
    %1060 = vmatpush2.msra.mxu0 0.0
    %1061 = vmatprep.subr.mxu0 0.0
    %1062 = vmatpush2.msra.mxu0 0.0
    %1063 = vmatprep.subr.mxu0 0.0
    %1064 = vmatpush2.msra.mxu0 0.0
    %1065 = vmatprep.subr.mxu0 0.0
    %1066 = vmatpush2.msra.mxu0 0.0
    %1067 = vmatprep.subr.mxu0 0.0
    %1068 = vmatpush2.msra.mxu0 0.0
    %1069 = vmatprep.subr.mxu0 0.0
    %1070 = vmatpush2.msra.mxu0 0.0
    %1071 = vmatprep.subr.mxu0 0.0
    %1072 = vmatpush2.msra.mxu0 0.0
    %1073 = vmatprep.subr.mxu0 0.0
    %1074 = vmatpush2.msra.mxu0 0.0
    %1075 = vmatprep.subr.mxu0 0.0
    %1076 = vmatpush2.msra.mxu0 0.0
    %1077 = vmatprep.mubr.f32.mxu0 0.0
    %1078 = vmatmul.mubr.f32.gmra.mxu0 %v937
    %v1079 = vpop.f32.mrf.mxu0
    %v1080 = vadd.f32 0.0, %v1079
    %v1081 = vpop.f32.mrf.mxu0
    %1082 = vdwg.mxu0
    %v1083 = vadd.f32 %v1080, %v246
    %v1084 = vadd.f32 %v939, %v1009
    %v1085 = vxor.u32 %v1084, 2147483648
    %v1086 = vmul.f32 %v1085, 1.442695
    %v1087 = vpow.pop %v1086
    %v1088 = vadd.f32 %v1087, 1.0
    %v1089 = vrcp.pop %v1088
    %v1090 = vmul.f32 1.0, %v1089
    %v1091 = vadd.f32 %v940, %v1011
    %v1092 = vxor.u32 %v1091, 2147483648
    %v1093 = vmul.f32 %v1092, 1.442695
    %v1094 = vpow.pop %v1093
    %v1095 = vadd.f32 %v1094, 1.0
    %v1096 = vrcp.pop %v1095
    %v1097 = vmul.f32 1.0, %v1096
    %v1098 = vmul.f32 %v1090, %v1083
    %v1099 = vadd.f32 %v941, %v1098
    %v1100 = vtanh.pop %v1099
    %v1101 = vsub.f32 1.0, %v1097
    %v1102 = vmul.f32 %v1101, %v1100
    %v1103 = vmul.f32 %v1097, %v937
    %v1104 = vadd.f32 %v1102, %v1103
    %s1105 = scalar_lea.vmem [#allocation3], 144
    %v1106 = vld [vmem:[%s1105] sm:$0xff]
    %v1107 = vld [vmem:[%s1105 + $0x8] sm:$0xff]
    %v1108 = vld [vmem:[%s1105 + $0x10] sm:$0xff]
    %1109 = vmatprep.subr.mxu0 %v94
    %1110 = vmatpush1.msra.mxu0 %v93
    %1111 = vmatprep.subr.mxu0 %v91
    %1112 = vmatpush1.msra.mxu0 %v90
    %1113 = vmatprep.subr.mxu0 %v88
    %1114 = vmatpush1.msra.mxu0 %v87
    %1115 = vmatprep.subr.mxu0 %v85
    %1116 = vmatpush1.msra.mxu0 %v84
    %1117 = vmatprep.subr.mxu0 %v82
    %1118 = vmatpush1.msra.mxu0 %v81
    %1119 = vmatprep.subr.mxu0 %v79
    %1120 = vmatpush1.msra.mxu0 %v78
    %1121 = vmatprep.subr.mxu0 %v76
    %1122 = vmatpush1.msra.mxu0 %v75
    %1123 = vmatprep.subr.mxu0 %v73
    %1124 = vmatpush1.msra.mxu0 %v72
    %1125 = vmatprep.subr.mxu0 %v70
    %1126 = vmatpush1.msra.mxu0 %v69
    %1127 = vmatprep.subr.mxu0 %v67
    %1128 = vmatpush1.msra.mxu0 %v66
    %1129 = vmatprep.subr.mxu0 %v64
    %1130 = vmatpush1.msra.mxu0 %v63
    %1131 = vmatprep.subr.mxu0 %v61
    %1132 = vmatpush1.msra.mxu0 %v60
    %1133 = vmatprep.subr.mxu0 %v58
    %1134 = vmatpush1.msra.mxu0 %v57
    %1135 = vmatprep.subr.mxu0 %v55
    %1136 = vmatpush1.msra.mxu0 %v54
    %1137 = vmatprep.subr.mxu0 %v52
    %1138 = vmatpush1.msra.mxu0 %v51
    %1139 = vmatprep.subr.mxu0 %v49
    %1140 = vmatpush1.msra.mxu0 %v48
    %1141 = vmatprep.subr.mxu0 0.0
    %1142 = vmatpush2.msra.mxu0 0.0
    %1143 = vmatprep.subr.mxu0 0.0
    %1144 = vmatpush2.msra.mxu0 0.0
    %1145 = vmatprep.subr.mxu0 0.0
    %1146 = vmatpush2.msra.mxu0 0.0
    %1147 = vmatprep.subr.mxu0 0.0
    %1148 = vmatpush2.msra.mxu0 0.0
    %1149 = vmatprep.subr.mxu0 0.0
    %1150 = vmatpush2.msra.mxu0 0.0
    %1151 = vmatprep.subr.mxu0 0.0
    %1152 = vmatpush2.msra.mxu0 0.0
    %1153 = vmatprep.subr.mxu0 0.0
    %1154 = vmatpush2.msra.mxu0 0.0
    %1155 = vmatprep.subr.mxu0 0.0
    %1156 = vmatpush2.msra.mxu0 0.0
    %1157 = vmatprep.subr.mxu0 0.0
    %1158 = vmatpush2.msra.mxu0 0.0
    %1159 = vmatprep.subr.mxu0 0.0
    %1160 = vmatpush2.msra.mxu0 0.0
    %1161 = vmatprep.subr.mxu0 0.0
    %1162 = vmatpush2.msra.mxu0 0.0
    %1163 = vmatprep.subr.mxu0 0.0
    %1164 = vmatpush2.msra.mxu0 0.0
    %1165 = vmatprep.subr.mxu0 0.0
    %1166 = vmatpush2.msra.mxu0 0.0
    %1167 = vmatprep.subr.mxu0 0.0
    %1168 = vmatpush2.msra.mxu0 0.0
    %1169 = vmatprep.subr.mxu0 0.0
    %1170 = vmatpush2.msra.mxu0 0.0
    %1171 = vmatprep.subr.mxu0 0.0
    %1172 = vmatpush2.msra.mxu0 0.0
    %1173 = vmatprep.mubr.f32.mxu0 0.0
    %1174 = vmatmul.mubr.f32.gmra.mxu0 %v1104
    %v1175 = vpop.f32.mrf.mxu0
    %v1176 = vadd.f32 0.0, %v1175
    %v1177 = vpop.f32.mrf.mxu0
    %v1178 = vadd.f32 0.0, %v1177
    %1179 = vdwg.mxu0
    %1180 = vmatprep.subr.mxu0 0.0
    %1181 = vmatpush1.msra.mxu0 %v95
    %1182 = vmatprep.subr.mxu0 0.0
    %1183 = vmatpush1.msra.mxu0 %v92
    %1184 = vmatprep.subr.mxu0 0.0
    %1185 = vmatpush1.msra.mxu0 %v89
    %1186 = vmatprep.subr.mxu0 0.0
    %1187 = vmatpush1.msra.mxu0 %v86
    %1188 = vmatprep.subr.mxu0 0.0
    %1189 = vmatpush1.msra.mxu0 %v83
    %1190 = vmatprep.subr.mxu0 0.0
    %1191 = vmatpush1.msra.mxu0 %v80
    %1192 = vmatprep.subr.mxu0 0.0
    %1193 = vmatpush1.msra.mxu0 %v77
    %1194 = vmatprep.subr.mxu0 0.0
    %1195 = vmatpush1.msra.mxu0 %v74
    %1196 = vmatprep.subr.mxu0 0.0
    %1197 = vmatpush1.msra.mxu0 %v71
    %1198 = vmatprep.subr.mxu0 0.0
    %1199 = vmatpush1.msra.mxu0 %v68
    %1200 = vmatprep.subr.mxu0 0.0
    %1201 = vmatpush1.msra.mxu0 %v65
    %1202 = vmatprep.subr.mxu0 0.0
    %1203 = vmatpush1.msra.mxu0 %v62
    %1204 = vmatprep.subr.mxu0 0.0
    %1205 = vmatpush1.msra.mxu0 %v59
    %1206 = vmatprep.subr.mxu0 0.0
    %1207 = vmatpush1.msra.mxu0 %v56
    %1208 = vmatprep.subr.mxu0 0.0
    %1209 = vmatpush1.msra.mxu0 %v53
    %1210 = vmatprep.subr.mxu0 0.0
    %1211 = vmatpush1.msra.mxu0 %v50
    %1212 = vmatprep.subr.mxu0 0.0
    %1213 = vmatpush2.msra.mxu0 0.0
    %1214 = vmatprep.subr.mxu0 0.0
    %1215 = vmatpush2.msra.mxu0 0.0
    %1216 = vmatprep.subr.mxu0 0.0
    %1217 = vmatpush2.msra.mxu0 0.0
    %1218 = vmatprep.subr.mxu0 0.0
    %1219 = vmatpush2.msra.mxu0 0.0
    %1220 = vmatprep.subr.mxu0 0.0
    %1221 = vmatpush2.msra.mxu0 0.0
    %1222 = vmatprep.subr.mxu0 0.0
    %1223 = vmatpush2.msra.mxu0 0.0
    %1224 = vmatprep.subr.mxu0 0.0
    %1225 = vmatpush2.msra.mxu0 0.0
    %1226 = vmatprep.subr.mxu0 0.0
    %1227 = vmatpush2.msra.mxu0 0.0
    %1228 = vmatprep.subr.mxu0 0.0
    %1229 = vmatpush2.msra.mxu0 0.0
    %1230 = vmatprep.subr.mxu0 0.0
    %1231 = vmatpush2.msra.mxu0 0.0
    %1232 = vmatprep.subr.mxu0 0.0
    %1233 = vmatpush2.msra.mxu0 0.0
    %1234 = vmatprep.subr.mxu0 0.0
    %1235 = vmatpush2.msra.mxu0 0.0
    %1236 = vmatprep.subr.mxu0 0.0
    %1237 = vmatpush2.msra.mxu0 0.0
    %1238 = vmatprep.subr.mxu0 0.0
    %1239 = vmatpush2.msra.mxu0 0.0
    %1240 = vmatprep.subr.mxu0 0.0
    %1241 = vmatpush2.msra.mxu0 0.0
    %1242 = vmatprep.subr.mxu0 0.0
    %1243 = vmatpush2.msra.mxu0 0.0
    %1244 = vmatprep.mubr.f32.mxu0 0.0
    %1245 = vmatmul.mubr.f32.gmra.mxu0 %v1104
    %v1246 = vpop.f32.mrf.mxu0
    %v1247 = vadd.f32 0.0, %v1246
    %v1248 = vpop.f32.mrf.mxu0
    %1249 = vdwg.mxu0
    %v1250 = vadd.f32 %v1247, %v246
    %v1251 = vadd.f32 %v1106, %v1176
    %v1252 = vxor.u32 %v1251, 2147483648
    %v1253 = vmul.f32 %v1252, 1.442695
    %v1254 = vpow.pop %v1253
    %v1255 = vadd.f32 %v1254, 1.0
    %v1256 = vrcp.pop %v1255
    %v1257 = vmul.f32 1.0, %v1256
    %v1258 = vadd.f32 %v1107, %v1178
    %v1259 = vxor.u32 %v1258, 2147483648
    %v1260 = vmul.f32 %v1259, 1.442695
    %v1261 = vpow.pop %v1260
    %v1262 = vadd.f32 %v1261, 1.0
    %v1263 = vrcp.pop %v1262
    %v1264 = vmul.f32 1.0, %v1263
    %v1265 = vmul.f32 %v1257, %v1250
    %v1266 = vadd.f32 %v1108, %v1265
    %v1267 = vtanh.pop %v1266
    %v1268 = vsub.f32 1.0, %v1264
    %v1269 = vmul.f32 %v1268, %v1267
    %v1270 = vmul.f32 %v1264, %v1104
    %v1271 = vadd.f32 %v1269, %v1270
    %s1272 = scalar_lea.vmem [#allocation3], 168
    %v1273 = vld [vmem:[%s1272] sm:$0xff]
    %v1274 = vld [vmem:[%s1272 + $0x8] sm:$0xff]
    %v1275 = vld [vmem:[%s1272 + $0x10] sm:$0xff]
    %1276 = vmatprep.subr.mxu0 %v94
    %1277 = vmatpush1.msra.mxu0 %v93
    %1278 = vmatprep.subr.mxu0 %v91
    %1279 = vmatpush1.msra.mxu0 %v90
    %1280 = vmatprep.subr.mxu0 %v88
    %1281 = vmatpush1.msra.mxu0 %v87
    %1282 = vmatprep.subr.mxu0 %v85
    %1283 = vmatpush1.msra.mxu0 %v84
    %1284 = vmatprep.subr.mxu0 %v82
    %1285 = vmatpush1.msra.mxu0 %v81
    %1286 = vmatprep.subr.mxu0 %v79
    %1287 = vmatpush1.msra.mxu0 %v78
    %1288 = vmatprep.subr.mxu0 %v76
    %1289 = vmatpush1.msra.mxu0 %v75
    %1290 = vmatprep.subr.mxu0 %v73
    %1291 = vmatpush1.msra.mxu0 %v72
    %1292 = vmatprep.subr.mxu0 %v70
    %1293 = vmatpush1.msra.mxu0 %v69
    %1294 = vmatprep.subr.mxu0 %v67
    %1295 = vmatpush1.msra.mxu0 %v66
    %1296 = vmatprep.subr.mxu0 %v64
    %1297 = vmatpush1.msra.mxu0 %v63
    %1298 = vmatprep.subr.mxu0 %v61
    %1299 = vmatpush1.msra.mxu0 %v60
    %1300 = vmatprep.subr.mxu0 %v58
    %1301 = vmatpush1.msra.mxu0 %v57
    %1302 = vmatprep.subr.mxu0 %v55
    %1303 = vmatpush1.msra.mxu0 %v54
    %1304 = vmatprep.subr.mxu0 %v52
    %1305 = vmatpush1.msra.mxu0 %v51
    %1306 = vmatprep.subr.mxu0 %v49
    %1307 = vmatpush1.msra.mxu0 %v48
    %1308 = vmatprep.subr.mxu0 0.0
    %1309 = vmatpush2.msra.mxu0 0.0
    %1310 = vmatprep.subr.mxu0 0.0
    %1311 = vmatpush2.msra.mxu0 0.0
    %1312 = vmatprep.subr.mxu0 0.0
    %1313 = vmatpush2.msra.mxu0 0.0
    %1314 = vmatprep.subr.mxu0 0.0
    %1315 = vmatpush2.msra.mxu0 0.0
    %1316 = vmatprep.subr.mxu0 0.0
    %1317 = vmatpush2.msra.mxu0 0.0
    %1318 = vmatprep.subr.mxu0 0.0
    %1319 = vmatpush2.msra.mxu0 0.0
    %1320 = vmatprep.subr.mxu0 0.0
    %1321 = vmatpush2.msra.mxu0 0.0
    %1322 = vmatprep.subr.mxu0 0.0
    %1323 = vmatpush2.msra.mxu0 0.0
    %1324 = vmatprep.subr.mxu0 0.0
    %1325 = vmatpush2.msra.mxu0 0.0
    %1326 = vmatprep.subr.mxu0 0.0
    %1327 = vmatpush2.msra.mxu0 0.0
    %1328 = vmatprep.subr.mxu0 0.0
    %1329 = vmatpush2.msra.mxu0 0.0
    %1330 = vmatprep.subr.mxu0 0.0
    %1331 = vmatpush2.msra.mxu0 0.0
    %1332 = vmatprep.subr.mxu0 0.0
    %1333 = vmatpush2.msra.mxu0 0.0
    %1334 = vmatprep.subr.mxu0 0.0
    %1335 = vmatpush2.msra.mxu0 0.0
    %1336 = vmatprep.subr.mxu0 0.0
    %1337 = vmatpush2.msra.mxu0 0.0
    %1338 = vmatprep.subr.mxu0 0.0
    %1339 = vmatpush2.msra.mxu0 0.0
    %1340 = vmatprep.mubr.f32.mxu0 0.0
    %1341 = vmatmul.mubr.f32.gmra.mxu0 %v1271
    %v1342 = vpop.f32.mrf.mxu0
    %v1343 = vadd.f32 0.0, %v1342
    %v1344 = vpop.f32.mrf.mxu0
    %v1345 = vadd.f32 0.0, %v1344
    %1346 = vdwg.mxu0
    %1347 = vmatprep.subr.mxu0 0.0
    %1348 = vmatpush1.msra.mxu0 %v95
    %1349 = vmatprep.subr.mxu0 0.0
    %1350 = vmatpush1.msra.mxu0 %v92
    %1351 = vmatprep.subr.mxu0 0.0
    %1352 = vmatpush1.msra.mxu0 %v89
    %1353 = vmatprep.subr.mxu0 0.0
    %1354 = vmatpush1.msra.mxu0 %v86
    %1355 = vmatprep.subr.mxu0 0.0
    %1356 = vmatpush1.msra.mxu0 %v83
    %1357 = vmatprep.subr.mxu0 0.0
    %1358 = vmatpush1.msra.mxu0 %v80
    %1359 = vmatprep.subr.mxu0 0.0
    %1360 = vmatpush1.msra.mxu0 %v77
    %1361 = vmatprep.subr.mxu0 0.0
    %1362 = vmatpush1.msra.mxu0 %v74
    %1363 = vmatprep.subr.mxu0 0.0
    %1364 = vmatpush1.msra.mxu0 %v71
    %1365 = vmatprep.subr.mxu0 0.0
    %1366 = vmatpush1.msra.mxu0 %v68
    %1367 = vmatprep.subr.mxu0 0.0
    %1368 = vmatpush1.msra.mxu0 %v65
    %1369 = vmatprep.subr.mxu0 0.0
    %1370 = vmatpush1.msra.mxu0 %v62
    %1371 = vmatprep.subr.mxu0 0.0
    %1372 = vmatpush1.msra.mxu0 %v59
    %1373 = vmatprep.subr.mxu0 0.0
    %1374 = vmatpush1.msra.mxu0 %v56
    %1375 = vmatprep.subr.mxu0 0.0
    %1376 = vmatpush1.msra.mxu0 %v53
    %1377 = vmatprep.subr.mxu0 0.0
    %1378 = vmatpush1.msra.mxu0 %v50
    %1379 = vmatprep.subr.mxu0 0.0
    %1380 = vmatpush2.msra.mxu0 0.0
    %1381 = vmatprep.subr.mxu0 0.0
    %1382 = vmatpush2.msra.mxu0 0.0
    %1383 = vmatprep.subr.mxu0 0.0
    %1384 = vmatpush2.msra.mxu0 0.0
    %1385 = vmatprep.subr.mxu0 0.0
    %1386 = vmatpush2.msra.mxu0 0.0
    %1387 = vmatprep.subr.mxu0 0.0
    %1388 = vmatpush2.msra.mxu0 0.0
    %1389 = vmatprep.subr.mxu0 0.0
    %1390 = vmatpush2.msra.mxu0 0.0
    %1391 = vmatprep.subr.mxu0 0.0
    %1392 = vmatpush2.msra.mxu0 0.0
    %1393 = vmatprep.subr.mxu0 0.0
    %1394 = vmatpush2.msra.mxu0 0.0
    %1395 = vmatprep.subr.mxu0 0.0
    %1396 = vmatpush2.msra.mxu0 0.0
    %1397 = vmatprep.subr.mxu0 0.0
    %1398 = vmatpush2.msra.mxu0 0.0
    %1399 = vmatprep.subr.mxu0 0.0
    %1400 = vmatpush2.msra.mxu0 0.0
    %1401 = vmatprep.subr.mxu0 0.0
    %1402 = vmatpush2.msra.mxu0 0.0
    %1403 = vmatprep.subr.mxu0 0.0
    %1404 = vmatpush2.msra.mxu0 0.0
    %1405 = vmatprep.subr.mxu0 0.0
    %1406 = vmatpush2.msra.mxu0 0.0
    %1407 = vmatprep.subr.mxu0 0.0
    %1408 = vmatpush2.msra.mxu0 0.0
    %1409 = vmatprep.subr.mxu0 0.0
    %1410 = vmatpush2.msra.mxu0 0.0
    %1411 = vmatprep.mubr.f32.mxu0 0.0
    %1412 = vmatmul.mubr.f32.gmra.mxu0 %v1271
    %v1413 = vpop.f32.mrf.mxu0
    %v1414 = vadd.f32 0.0, %v1413
    %v1415 = vpop.f32.mrf.mxu0
    %1416 = vdwg.mxu0
    %v1417 = vadd.f32 %v1414, %v246
    %v1418 = vadd.f32 %v1273, %v1343
    %v1419 = vxor.u32 %v1418, 2147483648
    %v1420 = vmul.f32 %v1419, 1.442695
    %v1421 = vpow.pop %v1420
    %v1422 = vadd.f32 %v1421, 1.0
    %v1423 = vrcp.pop %v1422
    %v1424 = vmul.f32 1.0, %v1423
    %v1425 = vadd.f32 %v1274, %v1345
    %v1426 = vxor.u32 %v1425, 2147483648
    %v1427 = vmul.f32 %v1426, 1.442695
    %v1428 = vpow.pop %v1427
    %v1429 = vadd.f32 %v1428, 1.0
    %v1430 = vrcp.pop %v1429
    %v1431 = vmul.f32 1.0, %v1430
    %v1432 = vmul.f32 %v1424, %v1417
    %v1433 = vadd.f32 %v1275, %v1432
    %v1434 = vtanh.pop %v1433
    %v1435 = vsub.f32 1.0, %v1431
    %v1436 = vmul.f32 %v1435, %v1434
    %v1437 = vmul.f32 %v1431, %v1271
    %v1438 = vadd.f32 %v1436, %v1437
    %1439 = vst [vmem:[#allocation2] sm:$0xff] %v1438
    // Predicated region
    $region26: #{tpu_custom_call.1} parent=1 // pred_check
      %p1440 = pneg %p43
    $region27: #{tpu_custom_call.1} parent=1 // pred_check_branch
      %1442 = sbr.rel (%p1440) target = $region29
    $region28: #{tpu_custom_call.1} parent=1 // pred_region
      %1443 = vst [vmem:[#allocation8] sm:$0xff] %v1438
    $region29: #{tpu_custom_call.1} parent=1 // pred_fallthru
      _
    // Predicated region
    $region30: #{tpu_custom_call.1} parent=1 // pred_check
      _
    $region31: #{tpu_custom_call.1} parent=1 // pred_check_branch
      %1445 = sbr.rel (0) target = $region33
    $region32: #{tpu_custom_call.1} parent=1 // pred_region
      %s1447 = ssub.s32 128, 128
      %1448 = vsyncadd [#allocation5], %s1447
      %s1450 = sshll.u32 [#allocation8], 4
      %s1451 = int_to_ptr.vmem [resolvable:$true] %s1450
      %1453 = dma.vmem_to_hbm [thread:$0]  %s1451, 128, %s3, [#allocation5]
    $region33: #{tpu_custom_call.1} parent=1 // pred_fallthru
      _
    // Predicated region
    $region34: #{tpu_custom_call.1} parent=1 // pred_check
      _
    $region35: #{tpu_custom_call.1} parent=1 // pred_check_branch
      %1455 = sbr.rel (0) target = $region37
    $region36: #{tpu_custom_call.1} parent=1 // pred_region
      %1456 = dma.done [#allocation5], 128
    $region37: #{tpu_custom_call.1} parent=1 // pred_fallthru
      _
    %1457 = vsyncpa [#allocation4], 1
    %1458 = vsyncpa [#allocation7], 1
    %1459 = vsyncpa [#allocation5], 1

</llo_original>
